<compile_context>
chip_gen: v6e
topology: v6e:2x2x1
jax: 0.10.0
libtpu: 0.0.40
codegen_flags: <defaults>
</compile_context>

<pallas_src>
import math
import jax
import jax.numpy as jnp
import numpy as np
from jax import lax
from jax.experimental import pallas as pl
from jax.experimental.pallas import tpu as pltpu


def _round_up(x, m):
    return (x + m - 1) // m * m


def _cdiv(a, b):
    return (a + b - 1) // b


# ----------------------------------------------------------------------------
# Kernel
# ----------------------------------------------------------------------------
def de_convkb_kernel(hs_ref, ts_ref, r_ref,
                     harg_ref, hamp_ref, targ_ref, tamp_ref,
                     wpack_ref, out_ref, acc_ref):
    """One batch tile.  Batch on sublanes, features on lanes.

      hs/ts      : (TB, S)    static entity embeddings
      r          : (TB, H)    relation embedding, H = S + T
      harg/targ  : (TB, 3T)   freq*t + phi, [year | month | day] groups (host-fused)
      hamp/tamp  : (TB, 3T)   amplitudes,   [year | month | day] groups
      wpack      : (5, C//2, 2H)  per-channel-pair rows:
                     0: conv w_h, 1: conv w_r, 2: conv w_t,
                     3: folded bias, 4: fc weights  (BN1/BN2 folded)
      out        : (1, TB)    lane-dense scores
      acc        : (TB, 2H)   VMEM scratch (per-row relu(z)*fc accumulator)
    """
    S = hs_ref.shape[1]
    H = r_ref.shape[1]
    T = harg_ref.shape[1] // 3
    n_pairs = wpack_ref.shape[1]
    tile_b = hs_ref.shape[0]

    RB = 32                       # row sub-block: keeps hd/rd/td/acc vreg-resident
    n_blocks = tile_b // RB

    # Hoisted once per tile (≈20 KB); indexed as a value inside the loops.
    wp = wpack_ref[...]           # (5, n_pairs, 2H)

    def block_body(j, carry):
        idx = pl.multiple_of(j * RB, RB)

        def time_embed(arg_ref, amp_ref):
            # amp * sin(arg) for y/m/d in one lane-dense pass, fold the 3 groups.
            s = amp_ref[pl.ds(idx, RB), :] * jnp.sin(arg_ref[pl.ds(idx, RB), :])
            return s[:, 0:T] + s[:, T:2 * T] + s[:, 2 * T:3 * T]        # (RB, T)

        h_full = jnp.concatenate(
            [hs_ref[pl.ds(idx, RB), :], time_embed(harg_ref, hamp_ref)], axis=1)
        t_full = jnp.concatenate(
            [ts_ref[pl.ds(idx, RB), :], time_embed(targ_ref, tamp_ref)], axis=1)
        r_full = r_ref[pl.ds(idx, RB), :]

        # Duplicate along lanes so each 2H-lane row carries two conv channels.
        hd = jnp.concatenate([h_full, h_full], axis=1)                  # (RB, 2H)
        rd = jnp.concatenate([r_full, r_full], axis=1)
        td = jnp.concatenate([t_full, t_full], axis=1)

        acc = jnp.zeros((RB, 2 * H), jnp.float32)
        # Static unroll over channel pairs (C=16 -> 8); all operands vreg-resident.
        for i in range(n_pairs):
            z = (hd * wp[0, i] + rd * wp[1, i] + td * wp[2, i] + wp[3, i])
            acc = acc + jnp.maximum(z, 0.0) * wp[4, i]

        acc_ref[pl.ds(idx, RB), :] = acc
        return carry

    lax.fori_loop(0, n_blocks, block_body, 0)

    # Single deferred cross-lane reduction per tile; lane-dense (1, TB) output.
    out_ref[...] = (-jnp.sum(acc_ref[...], axis=1))[None, :]


# ----------------------------------------------------------------------------
# Host-side one-time packing / BN folding (inference semantics)
# ----------------------------------------------------------------------------
def prepare_inference_params(params):
    C, H = params["fc_w"].shape
    assert C % 2 == 0, "channel-pair packing requires even out_channels"

    s1, b1 = params["bn1"][0], params["bn1"][1]
    s2, b2 = params["bn2_scale"], params["bn2_shift"]
    cw, cb = params["conv_w"], params["conv_b"]                    # (C, 3), (C,)

    wf = cw * s1 * s2[:, None]                                     # folded conv weight
    bf = s2 * (cb + b1 * jnp.sum(cw, axis=1)) + b2                 # folded bias

    def pack_pair(v):                                              # (C,) -> (C//2, 2H)
        return jnp.repeat(v.reshape(-1, 2), H, axis=1)

    wpack = jnp.stack([pack_pair(wf[:, 0]), pack_pair(wf[:, 1]), pack_pair(wf[:, 2]),
                       pack_pair(bf), params["fc_w"].reshape(C // 2, 2 * H)],
                      axis=0).astype(jnp.float32)                  # (5, C//2, 2H)

    return {
        "ent_embs": params["ent_embs"],
        "rel_embs": params["rel_embs"],
        "t_freq": jnp.concatenate([params["y_freq"], params["m_freq"], params["d_freq"]], axis=1),
        "t_phi": jnp.concatenate([params["y_phi"], params["m_phi"], params["d_phi"]], axis=1),
        "t_amp": jnp.concatenate([params["y_amp"], params["m_amp"], params["d_amp"]], axis=1),
        "wpack": wpack,
    }


# ----------------------------------------------------------------------------
# Forward wrapper
# ----------------------------------------------------------------------------
def de_convkb_forward(prep, heads, rels, tails, years, months, days, *, tile_b_max=2048):
    ent, rel = prep["ent_embs"], prep["rel_embs"]
    B = heads.shape[0]
    S = ent.shape[1]
    H = rel.shape[1]
    T = H - S
    C2 = prep["wpack"].shape[1]

    # ---- batch tiling ------------------------------------------------------
    # Lane-dense tiles (multiple of 128), and >=2 (even) grid steps whenever the
    # padded batch reaches 256 so v7x's second TensorCore gets work and the DMA
    # pipeline stays active.
    b_min = max(_round_up(B, 128), 128)
    if b_min <= 128:
        n_steps, tile_b = 1, 128
    else:
        n_steps = max(2, _round_up(_cdiv(b_min, tile_b_max), 2))
        tile_b = _round_up(_cdiv(b_min, n_steps), 128)
    b_pad = tile_b * n_steps
    pad = b_pad - B

    pad_i = lambda x: jnp.pad(x.astype(jnp.int32), (0, pad))
    pad_f = lambda x: jnp.pad(x.astype(jnp.float32), (0, pad))
    heads, rels, tails = pad_i(heads), pad_i(rels), pad_i(tails)
    years, months, days = pad_f(years), pad_f(months), pad_f(days)

    # ---- host-side gathers + fused time argument (fuses into the gather) ----
    hs, ts, r = ent[heads], ent[tails], rel[rels]
    tvals = jnp.concatenate([jnp.broadcast_to(years[:, None], (b_pad, T)),
                             jnp.broadcast_to(months[:, None], (b_pad, T)),
                             jnp.broadcast_to(days[:, None], (b_pad, T))], axis=1)
    harg = prep["t_freq"][heads] * tvals + prep["t_phi"][heads]      # (B_pad, 3T)
    hamp = prep["t_amp"][heads]
    targ = prep["t_freq"][tails] * tvals + prep["t_phi"][tails]
    tamp = prep["t_amp"][tails]

    grid = (n_steps,)
    row_spec = lambda f: pl.BlockSpec((tile_b, f), lambda b: (b, 0))
    in_specs = [row_spec(S), row_spec(S), row_spec(H),
                row_spec(3 * T), row_spec(3 * T), row_spec(3 * T), row_spec(3 * T),
                pl.BlockSpec((5, C2, 2 * H), lambda b: (0, 0, 0))]
    out_spec = pl.BlockSpec((1, tile_b), lambda b: (0, b))

    # ~4x the per-step streamed bytes (double-buffered inputs + scratch + slack).
    per_row_floats = 2 * S + H + 4 * 3 * T
    step_bytes = tile_b * (per_row_floats + 2 * H + 1) * 4 + 2 * 5 * C2 * 2 * H * 4
    vmem_limit = int(min(96 * 1024 * 1024, max(16 * 1024 * 1024, 4 * step_bytes)))

    out = pl.pallas_call(
        de_convkb_kernel,
        out_shape=jax.ShapeDtypeStruct((1, b_pad), jnp.float32),
        grid=grid,
        in_specs=in_specs,
        out_specs=out_spec,
        scratch_shapes=[pltpu.VMEM((tile_b, 2 * H), jnp.float32)],
        compiler_params=pltpu.CompilerParams(
            dimension_semantics=("parallel",),
            vmem_limit_bytes=vmem_limit),
    )(hs, ts, r, harg, hamp, targ, tamp, prep["wpack"])
    return out[0, :B]


# ----------------------------------------------------------------------------
# Pure-jnp reference mirroring the PyTorch forward (eval-mode BN / dropout)
# ----------------------------------------------------------------------------
def reference_forward(params, heads, rels, tails, years, months, days):
    ent_w = params["ent_embs"]
    rel_w = params["rel_embs"]
    yv, mv, dv = (x[:, None].astype(jnp.float32) for x in (years, months, days))

    def time_embed(idx):
        y = params["y_amp"][idx] * jnp.sin(params["y_freq"][idx] * yv + params["y_phi"][idx])
        m = params["m_amp"][idx] * jnp.sin(params["m_freq"][idx] * mv + params["m_phi"][idx])
        d = params["d_amp"][idx] * jnp.sin(params["d_freq"][idx] * dv + params["d_phi"][idx])
        return y + m + d

    h = jnp.concatenate([ent_w[heads], time_embed(heads)], axis=1)
    t = jnp.concatenate([ent_w[tails], time_embed(tails)], axis=1)
    r = rel_w[rels]
    conv_in = jnp.stack([h, r, t], axis=-1)                 # (B, H, 3) == NCHW (B,1,H,3)
    conv_in = conv_in * params["bn1"][0] + params["bn1"][1]
    conv_out = jnp.einsum("bhw,cw->bch", conv_in, params["conv_w"]) \
        + params["conv_b"][None, :, None]
    conv_out = conv_out * params["bn2_scale"][None, :, None] + params["bn2_shift"][None, :, None]
    z = jnp.maximum(conv_out, 0.0)                          # (B, C, H)
    C, H = params["fc_w"].shape
    flat = z.reshape(z.shape[0], C * H)                     # matches torch .view (c-major)
    score = flat @ params["fc_w"].reshape(C * H)
    return -score


# ----------------------------------------------------------------------------
# Parameter construction (matches the PyTorch module's init, eval-mode BN)
# ----------------------------------------------------------------------------
def make_params(key, num_ent, num_rel, s_dim, t_dim, out_channels):
    H = s_dim + t_dim
    eps = 1e-5

    def xavier(k, shape):
        bound = math.sqrt(6.0 / (shape[0] + shape[1]))
        return jax.random.uniform(k, shape, jnp.float32, -bound, bound)

    keys = jax.random.split(key, 16)
    return {
        "ent_embs": xavier(keys[0], (num_ent, s_dim)),
        "rel_embs": xavier(keys[1], (num_rel, H)),
        "y_freq": xavier(keys[2], (num_ent, t_dim)),
        "m_freq": xavier(keys[3], (num_ent, t_dim)),
        "d_freq": xavier(keys[4], (num_ent, t_dim)),
        "y_phi": xavier(keys[5], (num_ent, t_dim)),
        "m_phi": xavier(keys[6], (num_ent, t_dim)),
        "d_phi": xavier(keys[7], (num_ent, t_dim)),
        "y_amp": xavier(keys[8], (num_ent, t_dim)),
        "m_amp": xavier(keys[9], (num_ent, t_dim)),
        "d_amp": xavier(keys[10], (num_ent, t_dim)),
        # Conv2d(1, C, (1,3)) weight reshaped (C, 3); bias uniform(-1/sqrt(3), 1/sqrt(3))
        "conv_w": xavier(keys[11], (out_channels, 3)),
        "conv_b": jax.random.uniform(keys[12], (out_channels,), jnp.float32,
                                     -1.0 / math.sqrt(3.0), 1.0 / math.sqrt(3.0)),
        # fc_layer weight (1, C*H) xavier, reshaped to (C, H)
        "fc_w": xavier(keys[13], (1, out_channels * H)).reshape(out_channels, H),
        # eval-mode BatchNorm with default init
        "bn1": jnp.array([1.0 / math.sqrt(1.0 + eps), 0.0], jnp.float32),
        "bn2_scale": jnp.full((out_channels,), 1.0 / math.sqrt(1.0 + eps), jnp.float32),
        "bn2_shift": jnp.zeros((out_channels,), jnp.float32),
    }


def _run_case(params, prep, key, B, num_ent, num_rel):
    kh, kr, kt, ky, km, kd = jax.random.split(key, 6)
    heads = jax.random.randint(kh, (B,), 0, num_ent)
    rels = jax.random.randint(kr, (B,), 0, num_rel)
    tails = jax.random.randint(kt, (B,), 0, num_ent)
    years = jax.random.uniform(ky, (B,), jnp.float32, 0.0, 20.0)
    months = jax.random.uniform(km, (B,), jnp.float32, 1.0, 12.0)
    days = jax.random.uniform(kd, (B,), jnp.float32, 1.0, 31.0)

    out = de_convkb_forward(prep, heads, rels, tails, years, months, days)
    out = jax.block_until_ready(out)
    ref = reference_forward(params, heads, rels, tails, years, months, days)
    np.testing.assert_allclose(np.asarray(out), np.asarray(ref), rtol=1e-4, atol=1e-4)


if __name__ == "__main__":
    num_ent, num_rel = 50, 10
    s_dim, t_dim = 32, 32            # H = 64, 2H = 128 lanes (full vreg width)
    out_channels = 16

    key = jax.random.PRNGKey(0)
    kp, k1, k2 = jax.random.split(key, 3)
    params = make_params(kp, num_ent, num_rel, s_dim, t_dim, out_channels)
    prep = prepare_inference_params(params)

    _run_case(params, prep, k1, B=8, num_ent=num_ent, num_rel=num_rel)    # single-step grid
    _run_case(params, prep, k2, B=300, num_ent=num_ent, num_rel=num_rel)  # multi-step grid + padding

    print("KERNEL_OK")
</pallas_src>

<mosaic_0001>
module attributes {stable_mosaic.version = 11 : i64} {
  func.func @de_convkb_kernel(%arg0: i32, %arg1: memref<128x32xf32, #tpu.memory_space<vmem>>, %arg2: memref<128x32xf32, #tpu.memory_space<vmem>>, %arg3: memref<128x64xf32, #tpu.memory_space<vmem>>, %arg4: memref<128x96xf32, #tpu.memory_space<vmem>>, %arg5: memref<128x96xf32, #tpu.memory_space<vmem>>, %arg6: memref<128x96xf32, #tpu.memory_space<vmem>>, %arg7: memref<128x96xf32, #tpu.memory_space<vmem>>, %arg8: memref<5x8x128xf32, #tpu.memory_space<vmem>>, %arg9: memref<1x128xf32, #tpu.memory_space<vmem>>, %arg10: memref<128x128xf32, #tpu.memory_space<vmem>>) attributes {dimension_semantics = [#tpu.dimension_semantics<parallel>], iteration_bounds = array<i64: 1>, scalar_prefetch = 0 : i64, scratch_operands = 1 : i64, tpu.core_type = #tpu.core_type<tc>, window_params = [{transform_indices = @transform_0, window_bounds = array<i64: 128, 32>}, {transform_indices = @transform_1, window_bounds = array<i64: 128, 32>}, {transform_indices = @transform_2, window_bounds = array<i64: 128, 64>}, {transform_indices = @transform_3, window_bounds = array<i64: 128, 96>}, {transform_indices = @transform_4, window_bounds = array<i64: 128, 96>}, {transform_indices = @transform_5, window_bounds = array<i64: 128, 96>}, {transform_indices = @transform_6, window_bounds = array<i64: 128, 96>}, {pipeline_mode = #tpu.pipeline_mode<synchronous>, transform_indices = @transform_7, window_bounds = array<i64: 5, 8, 128>}, {transform_indices = @transform_8, window_bounds = array<i64: 1, 128>}]} {
    %c0 = arith.constant 0 : index
    %c0_0 = arith.constant 0 : index
    %c0_1 = arith.constant 0 : index
    %0 = vector.load %arg8[%c0, %c0_0, %c0_1] : memref<5x8x128xf32, #tpu.memory_space<vmem>>, vector<5x8x128xf32>
    %c0_i32 = arith.constant 0 : i32
    %c4_i32 = arith.constant 4 : i32
    %1 = arith.addi %c0_i32, %c4_i32 : i32
    %c1_i32 = arith.constant 1 : i32
    scf.for %arg11 = %c0_i32 to %1 step %c1_i32  : i32 {
      %c32_i32 = arith.constant 32 : i32
      %8 = arith.muli %arg11, %c32_i32 : i32
      %9 = tpu.assume_multiple %8, 32 : i32
      %10 = arith.index_cast %9 : i32 to index
      %c0_8 = arith.constant 0 : index
      %11 = vector.load %arg1[%10, %c0_8] : memref<128x32xf32, #tpu.memory_space<vmem>>, vector<32x32xf32>
      %12 = arith.index_cast %9 : i32 to index
      %c0_9 = arith.constant 0 : index
      %13 = vector.load %arg5[%12, %c0_9] : memref<128x96xf32, #tpu.memory_space<vmem>>, vector<32x96xf32>
      %14 = arith.index_cast %9 : i32 to index
      %c0_10 = arith.constant 0 : index
      %15 = vector.load %arg4[%14, %c0_10] : memref<128x96xf32, #tpu.memory_space<vmem>>, vector<32x96xf32>
      %16 = math.sin %15 : vector<32x96xf32>
      %17 = arith.mulf %13, %16 : vector<32x96xf32>
      %18 = vector.extract_strided_slice %17 {offsets = [0, 0], sizes = [32, 32], strides = [1, 1]} : vector<32x96xf32> to vector<32x32xf32>
      %19 = vector.extract_strided_slice %17 {offsets = [0, 32], sizes = [32, 32], strides = [1, 1]} : vector<32x96xf32> to vector<32x32xf32>
      %20 = arith.addf %18, %19 : vector<32x32xf32>
      %21 = vector.extract_strided_slice %17 {offsets = [0, 64], sizes = [32, 32], strides = [1, 1]} : vector<32x96xf32> to vector<32x32xf32>
      %22 = arith.addf %20, %21 : vector<32x32xf32>
      %23 = tpu.concatenate %11, %22 in 1 : vector<32x32xf32>, vector<32x32xf32> -> vector<32x64xf32>
      %24 = arith.index_cast %9 : i32 to index
      %c0_11 = arith.constant 0 : index
      %25 = vector.load %arg2[%24, %c0_11] : memref<128x32xf32, #tpu.memory_space<vmem>>, vector<32x32xf32>
      %26 = arith.index_cast %9 : i32 to index
      %c0_12 = arith.constant 0 : index
      %27 = vector.load %arg7[%26, %c0_12] : memref<128x96xf32, #tpu.memory_space<vmem>>, vector<32x96xf32>
      %28 = arith.index_cast %9 : i32 to index
      %c0_13 = arith.constant 0 : index
      %29 = vector.load %arg6[%28, %c0_13] : memref<128x96xf32, #tpu.memory_space<vmem>>, vector<32x96xf32>
      %30 = math.sin %29 : vector<32x96xf32>
      %31 = arith.mulf %27, %30 : vector<32x96xf32>
      %32 = vector.extract_strided_slice %31 {offsets = [0, 0], sizes = [32, 32], strides = [1, 1]} : vector<32x96xf32> to vector<32x32xf32>
      %33 = vector.extract_strided_slice %31 {offsets = [0, 32], sizes = [32, 32], strides = [1, 1]} : vector<32x96xf32> to vector<32x32xf32>
      %34 = arith.addf %32, %33 : vector<32x32xf32>
      %35 = vector.extract_strided_slice %31 {offsets = [0, 64], sizes = [32, 32], strides = [1, 1]} : vector<32x96xf32> to vector<32x32xf32>
      %36 = arith.addf %34, %35 : vector<32x32xf32>
      %37 = tpu.concatenate %25, %36 in 1 : vector<32x32xf32>, vector<32x32xf32> -> vector<32x64xf32>
      %38 = arith.index_cast %9 : i32 to index
      %c0_14 = arith.constant 0 : index
      %39 = vector.load %arg3[%38, %c0_14] : memref<128x64xf32, #tpu.memory_space<vmem>>, vector<32x64xf32>
      %40 = tpu.concatenate %23, %23 in 1 : vector<32x64xf32>, vector<32x64xf32> -> vector<32x128xf32>
      %41 = tpu.concatenate %39, %39 in 1 : vector<32x64xf32>, vector<32x64xf32> -> vector<32x128xf32>
      %42 = tpu.concatenate %37, %37 in 1 : vector<32x64xf32>, vector<32x64xf32> -> vector<32x128xf32>
      %cst_15 = arith.constant 0.000000e+00 : f32
      %43 = vector.broadcast %cst_15 : f32 to vector<32x128xf32>
      %44 = vector.extract_strided_slice %0 {offsets = [0, 0, 0], sizes = [1, 1, 128], strides = [1, 1, 1]} : vector<5x8x128xf32> to vector<1x1x128xf32>
      %45 = vector.shape_cast %44 : vector<1x1x128xf32> to vector<128xf32>
      %46 = vector.shape_cast %45 : vector<128xf32> to vector<1x128xf32>
      %47 = vector.broadcast %46 : vector<1x128xf32> to vector<32x128xf32>
      %48 = arith.mulf %40, %47 : vector<32x128xf32>
      %49 = vector.extract_strided_slice %0 {offsets = [1, 0, 0], sizes = [1, 1, 128], strides = [1, 1, 1]} : vector<5x8x128xf32> to vector<1x1x128xf32>
      %50 = vector.shape_cast %49 : vector<1x1x128xf32> to vector<128xf32>
      %51 = vector.shape_cast %50 : vector<128xf32> to vector<1x128xf32>
      %52 = vector.broadcast %51 : vector<1x128xf32> to vector<32x128xf32>
      %53 = arith.mulf %41, %52 : vector<32x128xf32>
      %54 = arith.addf %48, %53 : vector<32x128xf32>
      %55 = vector.extract_strided_slice %0 {offsets = [2, 0, 0], sizes = [1, 1, 128], strides = [1, 1, 1]} : vector<5x8x128xf32> to vector<1x1x128xf32>
      %56 = vector.shape_cast %55 : vector<1x1x128xf32> to vector<128xf32>
      %57 = vector.shape_cast %56 : vector<128xf32> to vector<1x128xf32>
      %58 = vector.broadcast %57 : vector<1x128xf32> to vector<32x128xf32>
      %59 = arith.mulf %42, %58 : vector<32x128xf32>
      %60 = arith.addf %54, %59 : vector<32x128xf32>
      %61 = vector.extract_strided_slice %0 {offsets = [3, 0, 0], sizes = [1, 1, 128], strides = [1, 1, 1]} : vector<5x8x128xf32> to vector<1x1x128xf32>
      %62 = vector.shape_cast %61 : vector<1x1x128xf32> to vector<128xf32>
      %63 = vector.shape_cast %62 : vector<128xf32> to vector<1x128xf32>
      %64 = vector.broadcast %63 : vector<1x128xf32> to vector<32x128xf32>
      %65 = arith.addf %60, %64 : vector<32x128xf32>
      %cst_16 = arith.constant 0.000000e+00 : f32
      %66 = vector.broadcast %cst_16 : f32 to vector<32x128xf32>
      %67 = arith.maximumf %65, %66 : vector<32x128xf32>
      %68 = vector.extract_strided_slice %0 {offsets = [4, 0, 0], sizes = [1, 1, 128], strides = [1, 1, 1]} : vector<5x8x128xf32> to vector<1x1x128xf32>
      %69 = vector.shape_cast %68 : vector<1x1x128xf32> to vector<128xf32>
      %70 = vector.shape_cast %69 : vector<128xf32> to vector<1x128xf32>
      %71 = vector.broadcast %70 : vector<1x128xf32> to vector<32x128xf32>
      %72 = arith.mulf %67, %71 : vector<32x128xf32>
      %73 = arith.addf %43, %72 : vector<32x128xf32>
      %74 = vector.extract_strided_slice %0 {offsets = [0, 1, 0], sizes = [1, 1, 128], strides = [1, 1, 1]} : vector<5x8x128xf32> to vector<1x1x128xf32>
      %75 = vector.shape_cast %74 : vector<1x1x128xf32> to vector<128xf32>
      %76 = vector.shape_cast %75 : vector<128xf32> to vector<1x128xf32>
      %77 = vector.broadcast %76 : vector<1x128xf32> to vector<32x128xf32>
      %78 = arith.mulf %40, %77 : vector<32x128xf32>
      %79 = vector.extract_strided_slice %0 {offsets = [1, 1, 0], sizes = [1, 1, 128], strides = [1, 1, 1]} : vector<5x8x128xf32> to vector<1x1x128xf32>
      %80 = vector.shape_cast %79 : vector<1x1x128xf32> to vector<128xf32>
      %81 = vector.shape_cast %80 : vector<128xf32> to vector<1x128xf32>
      %82 = vector.broadcast %81 : vector<1x128xf32> to vector<32x128xf32>
      %83 = arith.mulf %41, %82 : vector<32x128xf32>
      %84 = arith.addf %78, %83 : vector<32x128xf32>
      %85 = vector.extract_strided_slice %0 {offsets = [2, 1, 0], sizes = [1, 1, 128], strides = [1, 1, 1]} : vector<5x8x128xf32> to vector<1x1x128xf32>
      %86 = vector.shape_cast %85 : vector<1x1x128xf32> to vector<128xf32>
      %87 = vector.shape_cast %86 : vector<128xf32> to vector<1x128xf32>
      %88 = vector.broadcast %87 : vector<1x128xf32> to vector<32x128xf32>
      %89 = arith.mulf %42, %88 : vector<32x128xf32>
      %90 = arith.addf %84, %89 : vector<32x128xf32>
      %91 = vector.extract_strided_slice %0 {offsets = [3, 1, 0], sizes = [1, 1, 128], strides = [1, 1, 1]} : vector<5x8x128xf32> to vector<1x1x128xf32>
      %92 = vector.shape_cast %91 : vector<1x1x128xf32> to vector<128xf32>
      %93 = vector.shape_cast %92 : vector<128xf32> to vector<1x128xf32>
      %94 = vector.broadcast %93 : vector<1x128xf32> to vector<32x128xf32>
      %95 = arith.addf %90, %94 : vector<32x128xf32>
      %cst_17 = arith.constant 0.000000e+00 : f32
      %96 = vector.broadcast %cst_17 : f32 to vector<32x128xf32>
      %97 = arith.maximumf %95, %96 : vector<32x128xf32>
      %98 = vector.extract_strided_slice %0 {offsets = [4, 1, 0], sizes = [1, 1, 128], strides = [1, 1, 1]} : vector<5x8x128xf32> to vector<1x1x128xf32>
      %99 = vector.shape_cast %98 : vector<1x1x128xf32> to vector<128xf32>
      %100 = vector.shape_cast %99 : vector<128xf32> to vector<1x128xf32>
      %101 = vector.broadcast %100 : vector<1x128xf32> to vector<32x128xf32>
      %102 = arith.mulf %97, %101 : vector<32x128xf32>
      %103 = arith.addf %73, %102 : vector<32x128xf32>
      %104 = vector.extract_strided_slice %0 {offsets = [0, 2, 0], sizes = [1, 1, 128], strides = [1, 1, 1]} : vector<5x8x128xf32> to vector<1x1x128xf32>
      %105 = vector.shape_cast %104 : vector<1x1x128xf32> to vector<128xf32>
      %106 = vector.shape_cast %105 : vector<128xf32> to vector<1x128xf32>
      %107 = vector.broadcast %106 : vector<1x128xf32> to vector<32x128xf32>
      %108 = arith.mulf %40, %107 : vector<32x128xf32>
      %109 = vector.extract_strided_slice %0 {offsets = [1, 2, 0], sizes = [1, 1, 128], strides = [1, 1, 1]} : vector<5x8x128xf32> to vector<1x1x128xf32>
      %110 = vector.shape_cast %109 : vector<1x1x128xf32> to vector<128xf32>
      %111 = vector.shape_cast %110 : vector<128xf32> to vector<1x128xf32>
      %112 = vector.broadcast %111 : vector<1x128xf32> to vector<32x128xf32>
      %113 = arith.mulf %41, %112 : vector<32x128xf32>
      %114 = arith.addf %108, %113 : vector<32x128xf32>
      %115 = vector.extract_strided_slice %0 {offsets = [2, 2, 0], sizes = [1, 1, 128], strides = [1, 1, 1]} : vector<5x8x128xf32> to vector<1x1x128xf32>
      %116 = vector.shape_cast %115 : vector<1x1x128xf32> to vector<128xf32>
      %117 = vector.shape_cast %116 : vector<128xf32> to vector<1x128xf32>
      %118 = vector.broadcast %117 : vector<1x128xf32> to vector<32x128xf32>
      %119 = arith.mulf %42, %118 : vector<32x128xf32>
      %120 = arith.addf %114, %119 : vector<32x128xf32>
      %121 = vector.extract_strided_slice %0 {offsets = [3, 2, 0], sizes = [1, 1, 128], strides = [1, 1, 1]} : vector<5x8x128xf32> to vector<1x1x128xf32>
      %122 = vector.shape_cast %121 : vector<1x1x128xf32> to vector<128xf32>
      %123 = vector.shape_cast %122 : vector<128xf32> to vector<1x128xf32>
      %124 = vector.broadcast %123 : vector<1x128xf32> to vector<32x128xf32>
      %125 = arith.addf %120, %124 : vector<32x128xf32>
      %cst_18 = arith.constant 0.000000e+00 : f32
      %126 = vector.broadcast %cst_18 : f32 to vector<32x128xf32>
      %127 = arith.maximumf %125, %126 : vector<32x128xf32>
      %128 = vector.extract_strided_slice %0 {offsets = [4, 2, 0], sizes = [1, 1, 128], strides = [1, 1, 1]} : vector<5x8x128xf32> to vector<1x1x128xf32>
      %129 = vector.shape_cast %128 : vector<1x1x128xf32> to vector<128xf32>
      %130 = vector.shape_cast %129 : vector<128xf32> to vector<1x128xf32>
      %131 = vector.broadcast %130 : vector<1x128xf32> to vector<32x128xf32>
      %132 = arith.mulf %127, %131 : vector<32x128xf32>
      %133 = arith.addf %103, %132 : vector<32x128xf32>
      %134 = vector.extract_strided_slice %0 {offsets = [0, 3, 0], sizes = [1, 1, 128], strides = [1, 1, 1]} : vector<5x8x128xf32> to vector<1x1x128xf32>
      %135 = vector.shape_cast %134 : vector<1x1x128xf32> to vector<128xf32>
      %136 = vector.shape_cast %135 : vector<128xf32> to vector<1x128xf32>
      %137 = vector.broadcast %136 : vector<1x128xf32> to vector<32x128xf32>
      %138 = arith.mulf %40, %137 : vector<32x128xf32>
      %139 = vector.extract_strided_slice %0 {offsets = [1, 3, 0], sizes = [1, 1, 128], strides = [1, 1, 1]} : vector<5x8x128xf32> to vector<1x1x128xf32>
      %140 = vector.shape_cast %139 : vector<1x1x128xf32> to vector<128xf32>
      %141 = vector.shape_cast %140 : vector<128xf32> to vector<1x128xf32>
      %142 = vector.broadcast %141 : vector<1x128xf32> to vector<32x128xf32>
      %143 = arith.mulf %41, %142 : vector<32x128xf32>
      %144 = arith.addf %138, %143 : vector<32x128xf32>
      %145 = vector.extract_strided_slice %0 {offsets = [2, 3, 0], sizes = [1, 1, 128], strides = [1, 1, 1]} : vector<5x8x128xf32> to vector<1x1x128xf32>
      %146 = vector.shape_cast %145 : vector<1x1x128xf32> to vector<128xf32>
      %147 = vector.shape_cast %146 : vector<128xf32> to vector<1x128xf32>
      %148 = vector.broadcast %147 : vector<1x128xf32> to vector<32x128xf32>
      %149 = arith.mulf %42, %148 : vector<32x128xf32>
      %150 = arith.addf %144, %149 : vector<32x128xf32>
      %151 = vector.extract_strided_slice %0 {offsets = [3, 3, 0], sizes = [1, 1, 128], strides = [1, 1, 1]} : vector<5x8x128xf32> to vector<1x1x128xf32>
      %152 = vector.shape_cast %151 : vector<1x1x128xf32> to vector<128xf32>
      %153 = vector.shape_cast %152 : vector<128xf32> to vector<1x128xf32>
      %154 = vector.broadcast %153 : vector<1x128xf32> to vector<32x128xf32>
      %155 = arith.addf %150, %154 : vector<32x128xf32>
      %cst_19 = arith.constant 0.000000e+00 : f32
      %156 = vector.broadcast %cst_19 : f32 to vector<32x128xf32>
      %157 = arith.maximumf %155, %156 : vector<32x128xf32>
      %158 = vector.extract_strided_slice %0 {offsets = [4, 3, 0], sizes = [1, 1, 128], strides = [1, 1, 1]} : vector<5x8x128xf32> to vector<1x1x128xf32>
      %159 = vector.shape_cast %158 : vector<1x1x128xf32> to vector<128xf32>
      %160 = vector.shape_cast %159 : vector<128xf32> to vector<1x128xf32>
      %161 = vector.broadcast %160 : vector<1x128xf32> to vector<32x128xf32>
      %162 = arith.mulf %157, %161 : vector<32x128xf32>
      %163 = arith.addf %133, %162 : vector<32x128xf32>
      %164 = vector.extract_strided_slice %0 {offsets = [0, 4, 0], sizes = [1, 1, 128], strides = [1, 1, 1]} : vector<5x8x128xf32> to vector<1x1x128xf32>
      %165 = vector.shape_cast %164 : vector<1x1x128xf32> to vector<128xf32>
      %166 = vector.shape_cast %165 : vector<128xf32> to vector<1x128xf32>
      %167 = vector.broadcast %166 : vector<1x128xf32> to vector<32x128xf32>
      %168 = arith.mulf %40, %167 : vector<32x128xf32>
      %169 = vector.extract_strided_slice %0 {offsets = [1, 4, 0], sizes = [1, 1, 128], strides = [1, 1, 1]} : vector<5x8x128xf32> to vector<1x1x128xf32>
      %170 = vector.shape_cast %169 : vector<1x1x128xf32> to vector<128xf32>
      %171 = vector.shape_cast %170 : vector<128xf32> to vector<1x128xf32>
      %172 = vector.broadcast %171 : vector<1x128xf32> to vector<32x128xf32>
      %173 = arith.mulf %41, %172 : vector<32x128xf32>
      %174 = arith.addf %168, %173 : vector<32x128xf32>
      %175 = vector.extract_strided_slice %0 {offsets = [2, 4, 0], sizes = [1, 1, 128], strides = [1, 1, 1]} : vector<5x8x128xf32> to vector<1x1x128xf32>
      %176 = vector.shape_cast %175 : vector<1x1x128xf32> to vector<128xf32>
      %177 = vector.shape_cast %176 : vector<128xf32> to vector<1x128xf32>
      %178 = vector.broadcast %177 : vector<1x128xf32> to vector<32x128xf32>
      %179 = arith.mulf %42, %178 : vector<32x128xf32>
      %180 = arith.addf %174, %179 : vector<32x128xf32>
      %181 = vector.extract_strided_slice %0 {offsets = [3, 4, 0], sizes = [1, 1, 128], strides = [1, 1, 1]} : vector<5x8x128xf32> to vector<1x1x128xf32>
      %182 = vector.shape_cast %181 : vector<1x1x128xf32> to vector<128xf32>
      %183 = vector.shape_cast %182 : vector<128xf32> to vector<1x128xf32>
      %184 = vector.broadcast %183 : vector<1x128xf32> to vector<32x128xf32>
      %185 = arith.addf %180, %184 : vector<32x128xf32>
      %cst_20 = arith.constant 0.000000e+00 : f32
      %186 = vector.broadcast %cst_20 : f32 to vector<32x128xf32>
      %187 = arith.maximumf %185, %186 : vector<32x128xf32>
      %188 = vector.extract_strided_slice %0 {offsets = [4, 4, 0], sizes = [1, 1, 128], strides = [1, 1, 1]} : vector<5x8x128xf32> to vector<1x1x128xf32>
      %189 = vector.shape_cast %188 : vector<1x1x128xf32> to vector<128xf32>
      %190 = vector.shape_cast %189 : vector<128xf32> to vector<1x128xf32>
      %191 = vector.broadcast %190 : vector<1x128xf32> to vector<32x128xf32>
      %192 = arith.mulf %187, %191 : vector<32x128xf32>
      %193 = arith.addf %163, %192 : vector<32x128xf32>
      %194 = vector.extract_strided_slice %0 {offsets = [0, 5, 0], sizes = [1, 1, 128], strides = [1, 1, 1]} : vector<5x8x128xf32> to vector<1x1x128xf32>
      %195 = vector.shape_cast %194 : vector<1x1x128xf32> to vector<128xf32>
      %196 = vector.shape_cast %195 : vector<128xf32> to vector<1x128xf32>
      %197 = vector.broadcast %196 : vector<1x128xf32> to vector<32x128xf32>
      %198 = arith.mulf %40, %197 : vector<32x128xf32>
      %199 = vector.extract_strided_slice %0 {offsets = [1, 5, 0], sizes = [1, 1, 128], strides = [1, 1, 1]} : vector<5x8x128xf32> to vector<1x1x128xf32>
      %200 = vector.shape_cast %199 : vector<1x1x128xf32> to vector<128xf32>
      %201 = vector.shape_cast %200 : vector<128xf32> to vector<1x128xf32>
      %202 = vector.broadcast %201 : vector<1x128xf32> to vector<32x128xf32>
      %203 = arith.mulf %41, %202 : vector<32x128xf32>
      %204 = arith.addf %198, %203 : vector<32x128xf32>
      %205 = vector.extract_strided_slice %0 {offsets = [2, 5, 0], sizes = [1, 1, 128], strides = [1, 1, 1]} : vector<5x8x128xf32> to vector<1x1x128xf32>
      %206 = vector.shape_cast %205 : vector<1x1x128xf32> to vector<128xf32>
      %207 = vector.shape_cast %206 : vector<128xf32> to vector<1x128xf32>
      %208 = vector.broadcast %207 : vector<1x128xf32> to vector<32x128xf32>
      %209 = arith.mulf %42, %208 : vector<32x128xf32>
      %210 = arith.addf %204, %209 : vector<32x128xf32>
      %211 = vector.extract_strided_slice %0 {offsets = [3, 5, 0], sizes = [1, 1, 128], strides = [1, 1, 1]} : vector<5x8x128xf32> to vector<1x1x128xf32>
      %212 = vector.shape_cast %211 : vector<1x1x128xf32> to vector<128xf32>
      %213 = vector.shape_cast %212 : vector<128xf32> to vector<1x128xf32>
      %214 = vector.broadcast %213 : vector<1x128xf32> to vector<32x128xf32>
      %215 = arith.addf %210, %214 : vector<32x128xf32>
      %cst_21 = arith.constant 0.000000e+00 : f32
      %216 = vector.broadcast %cst_21 : f32 to vector<32x128xf32>
      %217 = arith.maximumf %215, %216 : vector<32x128xf32>
      %218 = vector.extract_strided_slice %0 {offsets = [4, 5, 0], sizes = [1, 1, 128], strides = [1, 1, 1]} : vector<5x8x128xf32> to vector<1x1x128xf32>
      %219 = vector.shape_cast %218 : vector<1x1x128xf32> to vector<128xf32>
      %220 = vector.shape_cast %219 : vector<128xf32> to vector<1x128xf32>
      %221 = vector.broadcast %220 : vector<1x128xf32> to vector<32x128xf32>
      %222 = arith.mulf %217, %221 : vector<32x128xf32>
      %223 = arith.addf %193, %222 : vector<32x128xf32>
      %224 = vector.extract_strided_slice %0 {offsets = [0, 6, 0], sizes = [1, 1, 128], strides = [1, 1, 1]} : vector<5x8x128xf32> to vector<1x1x128xf32>
      %225 = vector.shape_cast %224 : vector<1x1x128xf32> to vector<128xf32>
      %226 = vector.shape_cast %225 : vector<128xf32> to vector<1x128xf32>
      %227 = vector.broadcast %226 : vector<1x128xf32> to vector<32x128xf32>
      %228 = arith.mulf %40, %227 : vector<32x128xf32>
      %229 = vector.extract_strided_slice %0 {offsets = [1, 6, 0], sizes = [1, 1, 128], strides = [1, 1, 1]} : vector<5x8x128xf32> to vector<1x1x128xf32>
      %230 = vector.shape_cast %229 : vector<1x1x128xf32> to vector<128xf32>
      %231 = vector.shape_cast %230 : vector<128xf32> to vector<1x128xf32>
      %232 = vector.broadcast %231 : vector<1x128xf32> to vector<32x128xf32>
      %233 = arith.mulf %41, %232 : vector<32x128xf32>
      %234 = arith.addf %228, %233 : vector<32x128xf32>
      %235 = vector.extract_strided_slice %0 {offsets = [2, 6, 0], sizes = [1, 1, 128], strides = [1, 1, 1]} : vector<5x8x128xf32> to vector<1x1x128xf32>
      %236 = vector.shape_cast %235 : vector<1x1x128xf32> to vector<128xf32>
      %237 = vector.shape_cast %236 : vector<128xf32> to vector<1x128xf32>
      %238 = vector.broadcast %237 : vector<1x128xf32> to vector<32x128xf32>
      %239 = arith.mulf %42, %238 : vector<32x128xf32>
      %240 = arith.addf %234, %239 : vector<32x128xf32>
      %241 = vector.extract_strided_slice %0 {offsets = [3, 6, 0], sizes = [1, 1, 128], strides = [1, 1, 1]} : vector<5x8x128xf32> to vector<1x1x128xf32>
      %242 = vector.shape_cast %241 : vector<1x1x128xf32> to vector<128xf32>
      %243 = vector.shape_cast %242 : vector<128xf32> to vector<1x128xf32>
      %244 = vector.broadcast %243 : vector<1x128xf32> to vector<32x128xf32>
      %245 = arith.addf %240, %244 : vector<32x128xf32>
      %cst_22 = arith.constant 0.000000e+00 : f32
      %246 = vector.broadcast %cst_22 : f32 to vector<32x128xf32>
      %247 = arith.maximumf %245, %246 : vector<32x128xf32>
      %248 = vector.extract_strided_slice %0 {offsets = [4, 6, 0], sizes = [1, 1, 128], strides = [1, 1, 1]} : vector<5x8x128xf32> to vector<1x1x128xf32>
      %249 = vector.shape_cast %248 : vector<1x1x128xf32> to vector<128xf32>
      %250 = vector.shape_cast %249 : vector<128xf32> to vector<1x128xf32>
      %251 = vector.broadcast %250 : vector<1x128xf32> to vector<32x128xf32>
      %252 = arith.mulf %247, %251 : vector<32x128xf32>
      %253 = arith.addf %223, %252 : vector<32x128xf32>
      %254 = vector.extract_strided_slice %0 {offsets = [0, 7, 0], sizes = [1, 1, 128], strides = [1, 1, 1]} : vector<5x8x128xf32> to vector<1x1x128xf32>
      %255 = vector.shape_cast %254 : vector<1x1x128xf32> to vector<128xf32>
      %256 = vector.shape_cast %255 : vector<128xf32> to vector<1x128xf32>
      %257 = vector.broadcast %256 : vector<1x128xf32> to vector<32x128xf32>
      %258 = arith.mulf %40, %257 : vector<32x128xf32>
      %259 = vector.extract_strided_slice %0 {offsets = [1, 7, 0], sizes = [1, 1, 128], strides = [1, 1, 1]} : vector<5x8x128xf32> to vector<1x1x128xf32>
      %260 = vector.shape_cast %259 : vector<1x1x128xf32> to vector<128xf32>
      %261 = vector.shape_cast %260 : vector<128xf32> to vector<1x128xf32>
      %262 = vector.broadcast %261 : vector<1x128xf32> to vector<32x128xf32>
      %263 = arith.mulf %41, %262 : vector<32x128xf32>
      %264 = arith.addf %258, %263 : vector<32x128xf32>
      %265 = vector.extract_strided_slice %0 {offsets = [2, 7, 0], sizes = [1, 1, 128], strides = [1, 1, 1]} : vector<5x8x128xf32> to vector<1x1x128xf32>
      %266 = vector.shape_cast %265 : vector<1x1x128xf32> to vector<128xf32>
      %267 = vector.shape_cast %266 : vector<128xf32> to vector<1x128xf32>
      %268 = vector.broadcast %267 : vector<1x128xf32> to vector<32x128xf32>
      %269 = arith.mulf %42, %268 : vector<32x128xf32>
      %270 = arith.addf %264, %269 : vector<32x128xf32>
      %271 = vector.extract_strided_slice %0 {offsets = [3, 7, 0], sizes = [1, 1, 128], strides = [1, 1, 1]} : vector<5x8x128xf32> to vector<1x1x128xf32>
      %272 = vector.shape_cast %271 : vector<1x1x128xf32> to vector<128xf32>
      %273 = vector.shape_cast %272 : vector<128xf32> to vector<1x128xf32>
      %274 = vector.broadcast %273 : vector<1x128xf32> to vector<32x128xf32>
      %275 = arith.addf %270, %274 : vector<32x128xf32>
      %cst_23 = arith.constant 0.000000e+00 : f32
      %276 = vector.broadcast %cst_23 : f32 to vector<32x128xf32>
      %277 = arith.maximumf %275, %276 : vector<32x128xf32>
      %278 = vector.extract_strided_slice %0 {offsets = [4, 7, 0], sizes = [1, 1, 128], strides = [1, 1, 1]} : vector<5x8x128xf32> to vector<1x1x128xf32>
      %279 = vector.shape_cast %278 : vector<1x1x128xf32> to vector<128xf32>
      %280 = vector.shape_cast %279 : vector<128xf32> to vector<1x128xf32>
      %281 = vector.broadcast %280 : vector<1x128xf32> to vector<32x128xf32>
      %282 = arith.mulf %277, %281 : vector<32x128xf32>
      %283 = arith.addf %253, %282 : vector<32x128xf32>
      %284 = arith.index_cast %9 : i32 to index
      %c0_24 = arith.constant 0 : index
      %285 = vector.load %arg10[%284, %c0_24] : memref<128x128xf32, #tpu.memory_space<vmem>>, vector<32x128xf32>
      tpu.vector_store %arg10[%284, %c0_24], %283 {strides = array<i32>} : memref<128x128xf32, #tpu.memory_space<vmem>>, vector<32x128xf32>,
    }
    %c4_i32_2 = arith.constant 4 : i32
    %c0_3 = arith.constant 0 : index
    %c0_4 = arith.constant 0 : index
    %2 = vector.load %arg10[%c0_3, %c0_4] : memref<128x128xf32, #tpu.memory_space<vmem>>, vector<128x128xf32>
    %cst = arith.constant dense<0.000000e+00> : vector<128xf32>
    %3 = vector.multi_reduction <add>, %2, %cst [1] : vector<128x128xf32> to vector<128xf32>
    %cst_5 = arith.constant 0.000000e+00 : f32
    %4 = vector.broadcast %cst_5 : f32 to vector<128xf32>
    %5 = arith.subf %4, %3 : vector<128xf32>
    %6 = vector.shape_cast %5 : vector<128xf32> to vector<1x128xf32>
    %c0_6 = arith.constant 0 : index
    %c0_7 = arith.constant 0 : index
    %7 = vector.load %arg9[%c0_6, %c0_7] : memref<1x128xf32, #tpu.memory_space<vmem>>, vector<1x128xf32>
    tpu.vector_store %arg9[%c0_6, %c0_7], %6 {strides = array<i32>} : memref<1x128xf32, #tpu.memory_space<vmem>>, vector<1x128xf32>,
    return
  }
  func.func @transform_0(%arg0: i32) -> (i32, i32) {
    %c0_i32 = arith.constant 0 : i32
    %c0_i32_0 = arith.constant 0 : i32
    return %arg0, %c0_i32 : i32, i32
  }
  func.func @transform_1(%arg0: i32) -> (i32, i32) {
    %c0_i32 = arith.constant 0 : i32
    %c0_i32_0 = arith.constant 0 : i32
    return %arg0, %c0_i32 : i32, i32
  }
  func.func @transform_2(%arg0: i32) -> (i32, i32) {
    %c0_i32 = arith.constant 0 : i32
    %c0_i32_0 = arith.constant 0 : i32
    return %arg0, %c0_i32 : i32, i32
  }
  func.func @transform_3(%arg0: i32) -> (i32, i32) {
    %c0_i32 = arith.constant 0 : i32
    %c0_i32_0 = arith.constant 0 : i32
    return %arg0, %c0_i32 : i32, i32
  }
  func.func @transform_4(%arg0: i32) -> (i32, i32) {
    %c0_i32 = arith.constant 0 : i32
    %c0_i32_0 = arith.constant 0 : i32
    return %arg0, %c0_i32 : i32, i32
  }
  func.func @transform_5(%arg0: i32) -> (i32, i32) {
    %c0_i32 = arith.constant 0 : i32
    %c0_i32_0 = arith.constant 0 : i32
    return %arg0, %c0_i32 : i32, i32
  }
  func.func @transform_6(%arg0: i32) -> (i32, i32) {
    %c0_i32 = arith.constant 0 : i32
    %c0_i32_0 = arith.constant 0 : i32
    return %arg0, %c0_i32 : i32, i32
  }
  func.func @transform_7(%arg0: i32) -> (i32, i32, i32) {
    %c0_i32 = arith.constant 0 : i32
    %c0_i32_0 = arith.constant 0 : i32
    %c0_i32_1 = arith.constant 0 : i32
    %c0_i32_2 = arith.constant 0 : i32
    return %c0_i32, %c0_i32_0, %c0_i32_1 : i32, i32, i32
  }
  func.func @transform_8(%arg0: i32) -> (i32, i32) {
    %c0_i32 = arith.constant 0 : i32
    %c0_i32_0 = arith.constant 0 : i32
    return %c0_i32, %arg0 : i32, i32
  }
}

</mosaic_0001>

<llo_original>
// kernel: tpu_custom_call.1
$region0: #{tpu_custom_call.1}
  #allocation0 [shape = 'u32[]', space=smem, size = 0x4, offset = 0x4, fixed_abs, tag = 'smem constant byte address 0x4 - core index']
  #allocation1 [shape = 'u32[144,128]{1,0:T(1,128)}', space=vmem, size = 0x12000, scoped, tag = 'internal scratch']
  #allocation2 [shape = 'f32[128,128]{1,0:T(8,128)}', space=vmem, size = 0x10000, scoped, tag = 'scratch operand']
  %s0 = inlined_call_operand.vmem [shape: f32[128,32], index: 0, kind: input, shape index: {}]
  %s1 = inlined_call_operand.vmem [shape: f32[128,32], index: 1, kind: input, shape index: {}]
  %s2 = inlined_call_operand.vmem [shape: f32[128,64], index: 2, kind: input, shape index: {}]
  %s3 = inlined_call_operand.vmem [shape: f32[128,96], index: 3, kind: input, shape index: {}]
  %s4 = inlined_call_operand.vmem [shape: f32[128,96], index: 4, kind: input, shape index: {}]
  %s5 = inlined_call_operand.vmem [shape: f32[128,96], index: 5, kind: input, shape index: {}]
  %s6 = inlined_call_operand.vmem [shape: f32[128,96], index: 6, kind: input, shape index: {}]
  %s7 = inlined_call_operand.vmem [shape: f32[5,8,128], index: 7, kind: input, shape index: {}]
  %s8 = inlined_call_operand.hbm [shape: f32[1,128], index: 8, kind: output, shape index: {}]
  %s9 = sld [smem:[#allocation0]]
  $region49: #{tpu_custom_call.1} parent=0
    _
  %s11 = ssub.s32 1, %s9
  %s12 = scalar_select 0, %s11, %s9
  $region1: #{tpu_custom_call.1} parent=0
    #allocation3 [shape = 'u8[512]{0}', space=vmem, size = 0x400, scoped, tag = 'output window, operand 0, single buffered']
    #allocation4 [shape = 's32[1]{0}', space=sflag, size = 0x4, scoped, tag = 'scoped memory for tpu_custom_call.1']
    %13 = vsyncpa [#allocation4], 0
    // Predicated region
    $region2: #{tpu_custom_call.1} parent=1 // pred_check
      _
    $region3: #{tpu_custom_call.1} parent=1 // pred_check_branch
      %15 = sbr.rel (0) target = $region5
    $region4: #{tpu_custom_call.1} parent=1 // pred_region
      _
    $region5: #{tpu_custom_call.1} parent=1 // pred_fallthru
      _
    // Predicated region
    $region6: #{tpu_custom_call.1} parent=1 // pred_check
      _
    $region7: #{tpu_custom_call.1} parent=1 // pred_check_branch
      %17 = sbr.rel (0) target = $region9
    $region8: #{tpu_custom_call.1} parent=1 // pred_region
      _
    $region9: #{tpu_custom_call.1} parent=1 // pred_fallthru
      _
    // Predicated region
    $region10: #{tpu_custom_call.1} parent=1 // pred_check
      _
    $region11: #{tpu_custom_call.1} parent=1 // pred_check_branch
      %19 = sbr.rel (0) target = $region13
    $region12: #{tpu_custom_call.1} parent=1 // pred_region
      _
    $region13: #{tpu_custom_call.1} parent=1 // pred_fallthru
      _
    // Predicated region
    $region14: #{tpu_custom_call.1} parent=1 // pred_check
      _
    $region15: #{tpu_custom_call.1} parent=1 // pred_check_branch
      %21 = sbr.rel (0) target = $region17
    $region16: #{tpu_custom_call.1} parent=1 // pred_region
      _
    $region17: #{tpu_custom_call.1} parent=1 // pred_fallthru
      _
    // Predicated region
    $region18: #{tpu_custom_call.1} parent=1 // pred_check
      _
    $region19: #{tpu_custom_call.1} parent=1 // pred_check_branch
      %23 = sbr.rel (0) target = $region21
    $region20: #{tpu_custom_call.1} parent=1 // pred_region
      _
    $region21: #{tpu_custom_call.1} parent=1 // pred_fallthru
      _
    // Predicated region
    $region22: #{tpu_custom_call.1} parent=1 // pred_check
      _
    $region23: #{tpu_custom_call.1} parent=1 // pred_check_branch
      %25 = sbr.rel (0) target = $region25
    $region24: #{tpu_custom_call.1} parent=1 // pred_region
      _
    $region25: #{tpu_custom_call.1} parent=1 // pred_fallthru
      _
    // Predicated region
    $region26: #{tpu_custom_call.1} parent=1 // pred_check
      _
    $region27: #{tpu_custom_call.1} parent=1 // pred_check_branch
      %27 = sbr.rel (0) target = $region29
    $region28: #{tpu_custom_call.1} parent=1 // pred_region
      _
    $region29: #{tpu_custom_call.1} parent=1 // pred_fallthru
      _
    // Predicated region
    $region30: #{tpu_custom_call.1} parent=1 // pred_check
      _
    $region31: #{tpu_custom_call.1} parent=1 // pred_check_branch
      %29 = sbr.rel (0) target = $region33
    $region32: #{tpu_custom_call.1} parent=1 // pred_region
      _
    $region33: #{tpu_custom_call.1} parent=1 // pred_fallthru
      _
    %v30 = vld [vmem:[%s7] sm:$0xff]
    %v31 = vld [vmem:[%s7 + $0x8] sm:$0xff]
    %v32 = vld [vmem:[%s7 + $0x10] sm:$0xff]
    %v33 = vld [vmem:[%s7 + $0x18] sm:$0xff]
    %v34 = vld [vmem:[%s7 + $0x20] sm:$0xff]
    loop: start=0, step=1, limit=4
    $region34: #{tpu_custom_call.1} parent=1 // loop_pre_header
      _
    $region35: #{tpu_custom_call.1} parent=1 // loop_header
      %s36 = sphi 0, %s40
      %p37 = scmp.ge.s32.totalorder %s36, 4
    $region36: #{tpu_custom_call.1} parent=1 // loop_header_branch
      %39 = sbr.rel (%p37) target = $region40
    $region37: #{tpu_custom_call.1} parent=1 // loop_body
      %s41 = smul.u32 %s36, 32
      %s42 = scalar_lea.vmem %s0, %s41
      %v43 = vld [vmem:[%s42] sm:$0xff]
      %v44 = vld [vmem:[%s42 + $0x8] sm:$0xff]
      %v45 = vld [vmem:[%s42 + $0x10] sm:$0xff]
      %v46 = vld [vmem:[%s42 + $0x18] sm:$0xff]
      %s47 = scalar_lea.vmem %s4, %s41
      %v48 = vld [vmem:[%s47] sm:$0xff]
      %v49 = vld [vmem:[%s47 + $0x8] sm:$0xff]
      %v50 = vld [vmem:[%s47 + $0x10] sm:$0xff]
      %v51 = vld [vmem:[%s47 + $0x18] sm:$0xff]
      %s52 = scalar_lea.vmem %s3, %s41
      %v53 = vld [vmem:[%s52] sm:$0xff]
      %v54 = vld [vmem:[%s52 + $0x8] sm:$0xff]
      %v55 = vld [vmem:[%s52 + $0x10] sm:$0xff]
      %v56 = vld [vmem:[%s52 + $0x18] sm:$0xff]
      %v57 = vand.u32 2147483647, %v53
      %vm58 = vcmp.le.f32.partialorder %v57, 0.7853982
      %vm59 = vcmp.lt.s32.totalorder %v53, 0
      %v60 = vand.u32 %v53, 2139095040
      %v61 = vshrl.u32 %v60, 23
      %v62 = vsub.s32 %v61, 127
      %v63 = vand.u32 2147483647, %v53
      %v64 = vand.u32 %v63, 8388607
      %v65 = vor.u32 %v64, 8388608
      %v66 = vsub.s32 0, %v65
      %v67 = vadd.s32 %v62, 1
      %vm68 = vcmp.gt.s32.totalorder %v67, 0
      %v69 = vsel %vm68, %v67, 0
      %v70 = vshrl.u32 %v69, 5
      %v71 = vand.u32 %v69, 31
      %v72 = vsub.s32 32, %v71
      %v73 = vshrl.u32 683565275, %v72
      %v74 = vshll.u32 683565275, %v71
      %v75 = vshrl.u32 2475754826, %v72
      %v76 = vor.u32 %v74, %v75
      %v77 = vshll.u32 2475754826, %v71
      %v78 = vshrl.u32 2131351028, %v72
      %v79 = vor.u32 %v77, %v78
      %v80 = vshll.u32 2131351028, %v71
      %v81 = vshrl.u32 2102212464, %v72
      %v82 = vor.u32 %v80, %v81
      %v83 = vshll.u32 2102212464, %v71
      %v84 = vshrl.u32 920167782, %v72
      %v85 = vor.u32 %v83, %v84
      %v86 = vshll.u32 920167782, %v71
      %v87 = vshrl.u32 1326507024, %v72
      %v88 = vor.u32 %v86, %v87
      %vm89 = vcmp.lt.s32.totalorder %v70, 1
      %vm90 = vcmp.lt.s32.totalorder %v70, 2
      %vm91 = vcmp.lt.s32.totalorder %v70, 3
      %vm92 = vcmp.lt.s32.totalorder %v70, 4
      %v93 = vsel %vm89, %v73, %v76
      %v94 = vsel %vm92, %v82, 2102212464
      %v95 = vsel %vm91, %v79, %v94
      %v96 = vsel %vm90, %v93, %v95
      %v97 = vsel %vm89, %v76, %v79
      %v98 = vsel %vm92, %v85, 920167782
      %v99 = vsel %vm91, %v82, %v98
      %v100 = vsel %vm90, %v97, %v99
      %v101 = vsel %vm89, %v79, %v82
      %v102 = vsel %vm92, %v88, 1326507024
      %v103 = vsel %vm91, %v85, %v102
      %v104 = vsel %vm90, %v101, %v103
      %v105 = vshll.u32 %v65, 8
      %v106 = vmul.u32.u64.compose %v105, %v104
      %v107 = vextract.low.u32 %v106
      %v108 = vextract.high.u32 %v106
      %v109 = vmul.u32.u64.compose %v105, %v100
      %v110 = vextract.low.u32 %v109
      %v111 = vextract.high.u32 %v109
      %v112 = vmul.u32 %v105, %v96
      %v113 = vadd.s32 %v108, %v110
      %vm114 = vc.u32 %v108, %v110
      %v115 = vadd.s32 %v111, 1
      %v116 = vsel %vm114, %v115, %v111
      %v117 = vadd.s32 %v112, %v116
      %v118 = vadd.s32 %v117, 536870912
      %v119 = vshrl.u32 %v118, 30
      %v120 = vshll.u32 %v119, 30
      %v121 = vsub.s32 %v117, %v120
      %vm122 = vcmp.lt.s32.totalorder %v121, 0
      %v123 = vsub.s32 0, %v121
      %v124 = vsel %vm122, %v123, %v121
      %v125 = vclz %v124
      %v126 = vsub.s32 %v125, 2
      %vm127 = vcmp.gt.s32.totalorder 0, %v126
      %v128 = vsel %vm127, 0, %v126
      %v129 = vsub.s32 32, %v128
      %v130 = vshll.u32 %v121, %v128
      %v131 = vshrl.u32 %v113, %v129
      %v132 = vor.u32 %v130, %v131
      %v133 = vsub.s32 4294967266, %v128
      %v134 = vadd.s32 %v133, 127
      %v135 = vshll.u32 %v134, 23
      %v136 = vor.u32 4788187, %v135
      %v137 = vand.u32 2147483647, %v136
      %v139 = vcvt.s32.f32 %v132
      %v140 = vmul.f32 %v139, %v137
      %v141 = vxor.u32 %v140, 2147483648
      %v142 = vsel %vm59, %v141, %v140
      %v143 = vsub.s32 4, %v119
      %v144 = vsel %vm59, %v143, %v119
      %v145 = vsel %vm58, %v53, %v142
      %v146 = vsel %vm58, 0, %v144
      %v147 = vcosq.f32.pop %v145
      %v148 = vsinq.f32.pop %v145
      %vm149 = vweird.f32 %v53
      %v150 = vadd.s32 %v146, 3
      %v151 = vand.u32 %v150, 3
      %vm152 = vcmp.lt.s32.totalorder %v151, 2
      %vm153 = vcmp.eq.s32.totalorder %v151, 0
      %v154 = vxor.u32 %v148, 2147483648
      %v155 = vsel %vm153, %v147, %v154
      %vm156 = vcmp.eq.s32.totalorder %v151, 2
      %v157 = vxor.u32 %v147, 2147483648
      %v158 = vsel %vm156, %v157, %v148
      %v159 = vsel %vm152, %v155, %v158
      %v160 = vsel %vm149, nan, %v159
      %v161 = vand.u32 2147483647, %v54
      %vm162 = vcmp.le.f32.partialorder %v161, 0.7853982
      %vm163 = vcmp.lt.s32.totalorder %v54, 0
      %v164 = vand.u32 %v54, 2139095040
      %v165 = vshrl.u32 %v164, 23
      %v166 = vsub.s32 %v165, 127
      %v167 = vand.u32 2147483647, %v54
      %v168 = vand.u32 %v167, 8388607
      %v169 = vor.u32 %v168, 8388608
      %v170 = vsub.s32 0, %v169
      %v171 = vadd.s32 %v166, 1
      %vm172 = vcmp.gt.s32.totalorder %v171, 0
      %v173 = vsel %vm172, %v171, 0
      %v174 = vshrl.u32 %v173, 5
      %v175 = vand.u32 %v173, 31
      %v176 = vsub.s32 32, %v175
      %v177 = vshrl.u32 683565275, %v176
      %v178 = vshll.u32 683565275, %v175
      %v179 = vshrl.u32 2475754826, %v176
      %v180 = vor.u32 %v178, %v179
      %v181 = vshll.u32 2475754826, %v175
      %v182 = vshrl.u32 2131351028, %v176
      %v183 = vor.u32 %v181, %v182
      %v184 = vshll.u32 2131351028, %v175
      %v185 = vshrl.u32 2102212464, %v176
      %v186 = vor.u32 %v184, %v185
      %v187 = vshll.u32 2102212464, %v175
      %v188 = vshrl.u32 920167782, %v176
      %v189 = vor.u32 %v187, %v188
      %v190 = vshll.u32 920167782, %v175
      %v191 = vshrl.u32 1326507024, %v176
      %v192 = vor.u32 %v190, %v191
      %vm193 = vcmp.lt.s32.totalorder %v174, 1
      %vm194 = vcmp.lt.s32.totalorder %v174, 2
      %vm195 = vcmp.lt.s32.totalorder %v174, 3
      %vm196 = vcmp.lt.s32.totalorder %v174, 4
      %v197 = vsel %vm193, %v177, %v180
      %v198 = vsel %vm196, %v186, 2102212464
      %v199 = vsel %vm195, %v183, %v198
      %v200 = vsel %vm194, %v197, %v199
      %v201 = vsel %vm193, %v180, %v183
      %v202 = vsel %vm196, %v189, 920167782
      %v203 = vsel %vm195, %v186, %v202
      %v204 = vsel %vm194, %v201, %v203
      %v205 = vsel %vm193, %v183, %v186
      %v206 = vsel %vm196, %v192, 1326507024
      %v207 = vsel %vm195, %v189, %v206
      %v208 = vsel %vm194, %v205, %v207
      %v209 = vshll.u32 %v169, 8
      %v210 = vmul.u32.u64.compose %v209, %v208
      %v211 = vextract.low.u32 %v210
      %v212 = vextract.high.u32 %v210
      %v213 = vmul.u32.u64.compose %v209, %v204
      %v214 = vextract.low.u32 %v213
      %v215 = vextract.high.u32 %v213
      %v216 = vmul.u32 %v209, %v200
      %v217 = vadd.s32 %v212, %v214
      %vm218 = vc.u32 %v212, %v214
      %v219 = vadd.s32 %v215, 1
      %v220 = vsel %vm218, %v219, %v215
      %v221 = vadd.s32 %v216, %v220
      %v222 = vadd.s32 %v221, 536870912
      %v223 = vshrl.u32 %v222, 30
      %v224 = vshll.u32 %v223, 30
      %v225 = vsub.s32 %v221, %v224
      %vm226 = vcmp.lt.s32.totalorder %v225, 0
      %v227 = vsub.s32 0, %v225
      %v228 = vsel %vm226, %v227, %v225
      %v229 = vclz %v228
      %v230 = vsub.s32 %v229, 2
      %vm231 = vcmp.gt.s32.totalorder 0, %v230
      %v232 = vsel %vm231, 0, %v230
      %v233 = vsub.s32 32, %v232
      %v234 = vshll.u32 %v225, %v232
      %v235 = vshrl.u32 %v217, %v233
      %v236 = vor.u32 %v234, %v235
      %v237 = vsub.s32 4294967266, %v232
      %v238 = vadd.s32 %v237, 127
      %v239 = vshll.u32 %v238, 23
      %v240 = vor.u32 4788187, %v239
      %v241 = vand.u32 2147483647, %v240
      %v243 = vcvt.s32.f32 %v236
      %v244 = vmul.f32 %v243, %v241
      %v245 = vxor.u32 %v244, 2147483648
      %v246 = vsel %vm163, %v245, %v244
      %v247 = vsub.s32 4, %v223
      %v248 = vsel %vm163, %v247, %v223
      %v249 = vsel %vm162, %v54, %v246
      %v250 = vsel %vm162, 0, %v248
      %v251 = vcosq.f32.pop %v249
      %v252 = vsinq.f32.pop %v249
      %vm253 = vweird.f32 %v54
      %v254 = vadd.s32 %v250, 3
      %v255 = vand.u32 %v254, 3
      %vm256 = vcmp.lt.s32.totalorder %v255, 2
      %vm257 = vcmp.eq.s32.totalorder %v255, 0
      %v258 = vxor.u32 %v252, 2147483648
      %v259 = vsel %vm257, %v251, %v258
      %vm260 = vcmp.eq.s32.totalorder %v255, 2
      %v261 = vxor.u32 %v251, 2147483648
      %v262 = vsel %vm260, %v261, %v252
      %v263 = vsel %vm256, %v259, %v262
      %v264 = vsel %vm253, nan, %v263
      %v265 = vand.u32 2147483647, %v55
      %vm266 = vcmp.le.f32.partialorder %v265, 0.7853982
      %vm267 = vcmp.lt.s32.totalorder %v55, 0
      %v268 = vand.u32 %v55, 2139095040
      %v269 = vshrl.u32 %v268, 23
      %v270 = vsub.s32 %v269, 127
      %v271 = vand.u32 2147483647, %v55
      %v272 = vand.u32 %v271, 8388607
      %v273 = vor.u32 %v272, 8388608
      %v274 = vsub.s32 0, %v273
      %v275 = vadd.s32 %v270, 1
      %vm276 = vcmp.gt.s32.totalorder %v275, 0
      %v277 = vsel %vm276, %v275, 0
      %v278 = vshrl.u32 %v277, 5
      %v279 = vand.u32 %v277, 31
      %v280 = vsub.s32 32, %v279
      %v281 = vshrl.u32 683565275, %v280
      %v282 = vshll.u32 683565275, %v279
      %v283 = vshrl.u32 2475754826, %v280
      %v284 = vor.u32 %v282, %v283
      %v285 = vshll.u32 2475754826, %v279
      %v286 = vshrl.u32 2131351028, %v280
      %v287 = vor.u32 %v285, %v286
      %v288 = vshll.u32 2131351028, %v279
      %v289 = vshrl.u32 2102212464, %v280
      %v290 = vor.u32 %v288, %v289
      %v291 = vshll.u32 2102212464, %v279
      %v292 = vshrl.u32 920167782, %v280
      %v293 = vor.u32 %v291, %v292
      %v294 = vshll.u32 920167782, %v279
      %v295 = vshrl.u32 1326507024, %v280
      %v296 = vor.u32 %v294, %v295
      %vm297 = vcmp.lt.s32.totalorder %v278, 1
      %vm298 = vcmp.lt.s32.totalorder %v278, 2
      %vm299 = vcmp.lt.s32.totalorder %v278, 3
      %vm300 = vcmp.lt.s32.totalorder %v278, 4
      %v301 = vsel %vm297, %v281, %v284
      %v302 = vsel %vm300, %v290, 2102212464
      %v303 = vsel %vm299, %v287, %v302
      %v304 = vsel %vm298, %v301, %v303
      %v305 = vsel %vm297, %v284, %v287
      %v306 = vsel %vm300, %v293, 920167782
      %v307 = vsel %vm299, %v290, %v306
      %v308 = vsel %vm298, %v305, %v307
      %v309 = vsel %vm297, %v287, %v290
      %v310 = vsel %vm300, %v296, 1326507024
      %v311 = vsel %vm299, %v293, %v310
      %v312 = vsel %vm298, %v309, %v311
      %v313 = vshll.u32 %v273, 8
      %v314 = vmul.u32.u64.compose %v313, %v312
      %v315 = vextract.low.u32 %v314
      %v316 = vextract.high.u32 %v314
      %v317 = vmul.u32.u64.compose %v313, %v308
      %v318 = vextract.low.u32 %v317
      %v319 = vextract.high.u32 %v317
      %v320 = vmul.u32 %v313, %v304
      %v321 = vadd.s32 %v316, %v318
      %vm322 = vc.u32 %v316, %v318
      %v323 = vadd.s32 %v319, 1
      %v324 = vsel %vm322, %v323, %v319
      %v325 = vadd.s32 %v320, %v324
      %v326 = vadd.s32 %v325, 536870912
      %v327 = vshrl.u32 %v326, 30
      %v328 = vshll.u32 %v327, 30
      %v329 = vsub.s32 %v325, %v328
      %vm330 = vcmp.lt.s32.totalorder %v329, 0
      %v331 = vsub.s32 0, %v329
      %v332 = vsel %vm330, %v331, %v329
      %v333 = vclz %v332
      %v334 = vsub.s32 %v333, 2
      %vm335 = vcmp.gt.s32.totalorder 0, %v334
      %v336 = vsel %vm335, 0, %v334
      %v337 = vsub.s32 32, %v336
      %v338 = vshll.u32 %v329, %v336
      %v339 = vshrl.u32 %v321, %v337
      %v340 = vor.u32 %v338, %v339
      %v341 = vsub.s32 4294967266, %v336
      %v342 = vadd.s32 %v341, 127
      %v343 = vshll.u32 %v342, 23
      %v344 = vor.u32 4788187, %v343
      %v345 = vand.u32 2147483647, %v344
      %v347 = vcvt.s32.f32 %v340
      %v348 = vmul.f32 %v347, %v345
      %v349 = vxor.u32 %v348, 2147483648
      %v350 = vsel %vm267, %v349, %v348
      %v351 = vsub.s32 4, %v327
      %v352 = vsel %vm267, %v351, %v327
      %v353 = vsel %vm266, %v55, %v350
      %v354 = vsel %vm266, 0, %v352
      %v355 = vcosq.f32.pop %v353
      %v356 = vsinq.f32.pop %v353
      %vm357 = vweird.f32 %v55
      %v358 = vadd.s32 %v354, 3
      %v359 = vand.u32 %v358, 3
      %vm360 = vcmp.lt.s32.totalorder %v359, 2
      %vm361 = vcmp.eq.s32.totalorder %v359, 0
      %v362 = vxor.u32 %v356, 2147483648
      %v363 = vsel %vm361, %v355, %v362
      %vm364 = vcmp.eq.s32.totalorder %v359, 2
      %v365 = vxor.u32 %v355, 2147483648
      %v366 = vsel %vm364, %v365, %v356
      %v367 = vsel %vm360, %v363, %v366
      %v368 = vsel %vm357, nan, %v367
      %v369 = vand.u32 2147483647, %v56
      %vm370 = vcmp.le.f32.partialorder %v369, 0.7853982
      %vm371 = vcmp.lt.s32.totalorder %v56, 0
      %v372 = vand.u32 %v56, 2139095040
      %v373 = vshrl.u32 %v372, 23
      %v374 = vsub.s32 %v373, 127
      %v375 = vand.u32 2147483647, %v56
      %v376 = vand.u32 %v375, 8388607
      %v377 = vor.u32 %v376, 8388608
      %v378 = vsub.s32 0, %v377
      %v379 = vadd.s32 %v374, 1
      %vm380 = vcmp.gt.s32.totalorder %v379, 0
      %v381 = vsel %vm380, %v379, 0
      %v382 = vshrl.u32 %v381, 5
      %v383 = vand.u32 %v381, 31
      %v384 = vsub.s32 32, %v383
      %v385 = vshrl.u32 683565275, %v384
      %v386 = vshll.u32 683565275, %v383
      %v387 = vshrl.u32 2475754826, %v384
      %v388 = vor.u32 %v386, %v387
      %v389 = vshll.u32 2475754826, %v383
      %v390 = vshrl.u32 2131351028, %v384
      %v391 = vor.u32 %v389, %v390
      %v392 = vshll.u32 2131351028, %v383
      %v393 = vshrl.u32 2102212464, %v384
      %v394 = vor.u32 %v392, %v393
      %v395 = vshll.u32 2102212464, %v383
      %v396 = vshrl.u32 920167782, %v384
      %v397 = vor.u32 %v395, %v396
      %v398 = vshll.u32 920167782, %v383
      %v399 = vshrl.u32 1326507024, %v384
      %v400 = vor.u32 %v398, %v399
      %vm401 = vcmp.lt.s32.totalorder %v382, 1
      %vm402 = vcmp.lt.s32.totalorder %v382, 2
      %vm403 = vcmp.lt.s32.totalorder %v382, 3
      %vm404 = vcmp.lt.s32.totalorder %v382, 4
      %v405 = vsel %vm401, %v385, %v388
      %v406 = vsel %vm404, %v394, 2102212464
      %v407 = vsel %vm403, %v391, %v406
      %v408 = vsel %vm402, %v405, %v407
      %v409 = vsel %vm401, %v388, %v391
      %v410 = vsel %vm404, %v397, 920167782
      %v411 = vsel %vm403, %v394, %v410
      %v412 = vsel %vm402, %v409, %v411
      %v413 = vsel %vm401, %v391, %v394
      %v414 = vsel %vm404, %v400, 1326507024
      %v415 = vsel %vm403, %v397, %v414
      %v416 = vsel %vm402, %v413, %v415
      %v417 = vshll.u32 %v377, 8
      %v418 = vmul.u32.u64.compose %v417, %v416
      %v419 = vextract.low.u32 %v418
      %v420 = vextract.high.u32 %v418
      %v421 = vmul.u32.u64.compose %v417, %v412
      %v422 = vextract.low.u32 %v421
      %v423 = vextract.high.u32 %v421
      %v424 = vmul.u32 %v417, %v408
      %v425 = vadd.s32 %v420, %v422
      %vm426 = vc.u32 %v420, %v422
      %v427 = vadd.s32 %v423, 1
      %v428 = vsel %vm426, %v427, %v423
      %v429 = vadd.s32 %v424, %v428
      %v430 = vadd.s32 %v429, 536870912
      %v431 = vshrl.u32 %v430, 30
      %v432 = vshll.u32 %v431, 30
      %v433 = vsub.s32 %v429, %v432
      %vm434 = vcmp.lt.s32.totalorder %v433, 0
      %v435 = vsub.s32 0, %v433
      %v436 = vsel %vm434, %v435, %v433
      %v437 = vclz %v436
      %v438 = vsub.s32 %v437, 2
      %vm439 = vcmp.gt.s32.totalorder 0, %v438
      %v440 = vsel %vm439, 0, %v438
      %v441 = vsub.s32 32, %v440
      %v442 = vshll.u32 %v433, %v440
      %v443 = vshrl.u32 %v425, %v441
      %v444 = vor.u32 %v442, %v443
      %v445 = vsub.s32 4294967266, %v440
      %v446 = vadd.s32 %v445, 127
      %v447 = vshll.u32 %v446, 23
      %v448 = vor.u32 4788187, %v447
      %v449 = vand.u32 2147483647, %v448
      %v451 = vcvt.s32.f32 %v444
      %v452 = vmul.f32 %v451, %v449
      %v453 = vxor.u32 %v452, 2147483648
      %v454 = vsel %vm371, %v453, %v452
      %v455 = vsub.s32 4, %v431
      %v456 = vsel %vm371, %v455, %v431
      %v457 = vsel %vm370, %v56, %v454
      %v458 = vsel %vm370, 0, %v456
      %v459 = vcosq.f32.pop %v457
      %v460 = vsinq.f32.pop %v457
      %vm461 = vweird.f32 %v56
      %v462 = vadd.s32 %v458, 3
      %v463 = vand.u32 %v462, 3
      %vm464 = vcmp.lt.s32.totalorder %v463, 2
      %vm465 = vcmp.eq.s32.totalorder %v463, 0
      %v466 = vxor.u32 %v460, 2147483648
      %v467 = vsel %vm465, %v459, %v466
      %vm468 = vcmp.eq.s32.totalorder %v463, 2
      %v469 = vxor.u32 %v459, 2147483648
      %v470 = vsel %vm468, %v469, %v460
      %v471 = vsel %vm464, %v467, %v470
      %v472 = vsel %vm461, nan, %v471
      %v473 = vmul.f32 %v48, %v160
      %v474 = vmul.f32 %v49, %v264
      %v475 = vmul.f32 %v50, %v368
      %v476 = vmul.f32 %v51, %v472
      %481 = vrot.lane.b32.xlu0 %v473, 96
      %v482 = vpop.permute.xlu0 %481
      %483 = vrot.lane.b32.xlu0 %v474, 96
      %v484 = vpop.permute.xlu0 %483
      %485 = vrot.lane.b32.xlu0 %v475, 96
      %v486 = vpop.permute.xlu0 %485
      %487 = vrot.lane.b32.xlu0 %v476, 96
      %v488 = vpop.permute.xlu0 %487
      %v493 = vadd.f32 %v473, %v482
      %v494 = vadd.f32 %v474, %v484
      %v495 = vadd.f32 %v475, %v486
      %v496 = vadd.f32 %v476, %v488
      %497 = vrot.lane.b32.xlu0 %v473, 64
      %v498 = vpop.permute.xlu0 %497
      %499 = vrot.lane.b32.xlu0 %v474, 64
      %v500 = vpop.permute.xlu0 %499
      %501 = vrot.lane.b32.xlu0 %v475, 64
      %v502 = vpop.permute.xlu0 %501
      %503 = vrot.lane.b32.xlu0 %v476, 64
      %v504 = vpop.permute.xlu0 %503
      %v509 = vadd.f32 %v493, %v498
      %v510 = vadd.f32 %v494, %v500
      %v511 = vadd.f32 %v495, %v502
      %v512 = vadd.f32 %v496, %v504
      %517 = vrot.lane.b32.xlu0 %v509, 32
      %v518 = vpop.permute.xlu0 %517
      %519 = vrot.lane.b32.xlu0 %v510, 32
      %v520 = vpop.permute.xlu0 %519
      %521 = vrot.lane.b32.xlu0 %v511, 32
      %v522 = vpop.permute.xlu0 %521
      %523 = vrot.lane.b32.xlu0 %v512, 32
      %v524 = vpop.permute.xlu0 %523
      %vm529 = vcmask 261120
      %v530 = vsel %vm529, %v43, %v518
      %v531 = vsel %vm529, %v44, %v520
      %v532 = vsel %vm529, %v45, %v522
      %v533 = vsel %vm529, %v46, %v524
      %s534 = scalar_lea.vmem %s1, %s41
      %v535 = vld [vmem:[%s534] sm:$0xff]
      %v536 = vld [vmem:[%s534 + $0x8] sm:$0xff]
      %v537 = vld [vmem:[%s534 + $0x10] sm:$0xff]
      %v538 = vld [vmem:[%s534 + $0x18] sm:$0xff]
      %s539 = scalar_lea.vmem %s6, %s41
      %v540 = vld [vmem:[%s539] sm:$0xff]
      %v541 = vld [vmem:[%s539 + $0x8] sm:$0xff]
      %v542 = vld [vmem:[%s539 + $0x10] sm:$0xff]
      %v543 = vld [vmem:[%s539 + $0x18] sm:$0xff]
      %s544 = scalar_lea.vmem %s5, %s41
      %v545 = vld [vmem:[%s544] sm:$0xff]
      %v546 = vld [vmem:[%s544 + $0x8] sm:$0xff]
      %v547 = vld [vmem:[%s544 + $0x10] sm:$0xff]
      %v548 = vld [vmem:[%s544 + $0x18] sm:$0xff]
      %v549 = vand.u32 2147483647, %v545
      %vm550 = vcmp.le.f32.partialorder %v549, 0.7853982
      %vm551 = vcmp.lt.s32.totalorder %v545, 0
      %v552 = vand.u32 %v545, 2139095040
      %v553 = vshrl.u32 %v552, 23
      %v554 = vsub.s32 %v553, 127
      %v555 = vand.u32 2147483647, %v545
      %v556 = vand.u32 %v555, 8388607
      %v557 = vor.u32 %v556, 8388608
      %v558 = vsub.s32 0, %v557
      %v559 = vadd.s32 %v554, 1
      %vm560 = vcmp.gt.s32.totalorder %v559, 0
      %v561 = vsel %vm560, %v559, 0
      %v562 = vshrl.u32 %v561, 5
      %v563 = vand.u32 %v561, 31
      %v564 = vsub.s32 32, %v563
      %v565 = vshrl.u32 683565275, %v564
      %v566 = vshll.u32 683565275, %v563
      %v567 = vshrl.u32 2475754826, %v564
      %v568 = vor.u32 %v566, %v567
      %v569 = vshll.u32 2475754826, %v563
      %v570 = vshrl.u32 2131351028, %v564
      %v571 = vor.u32 %v569, %v570
      %v572 = vshll.u32 2131351028, %v563
      %v573 = vshrl.u32 2102212464, %v564
      %v574 = vor.u32 %v572, %v573
      %v575 = vshll.u32 2102212464, %v563
      %v576 = vshrl.u32 920167782, %v564
      %v577 = vor.u32 %v575, %v576
      %v578 = vshll.u32 920167782, %v563
      %v579 = vshrl.u32 1326507024, %v564
      %v580 = vor.u32 %v578, %v579
      %vm581 = vcmp.lt.s32.totalorder %v562, 1
      %vm582 = vcmp.lt.s32.totalorder %v562, 2
      %vm583 = vcmp.lt.s32.totalorder %v562, 3
      %vm584 = vcmp.lt.s32.totalorder %v562, 4
      %v585 = vsel %vm581, %v565, %v568
      %v586 = vsel %vm584, %v574, 2102212464
      %v587 = vsel %vm583, %v571, %v586
      %v588 = vsel %vm582, %v585, %v587
      %v589 = vsel %vm581, %v568, %v571
      %v590 = vsel %vm584, %v577, 920167782
      %v591 = vsel %vm583, %v574, %v590
      %v592 = vsel %vm582, %v589, %v591
      %v593 = vsel %vm581, %v571, %v574
      %v594 = vsel %vm584, %v580, 1326507024
      %v595 = vsel %vm583, %v577, %v594
      %v596 = vsel %vm582, %v593, %v595
      %v597 = vshll.u32 %v557, 8
      %v598 = vmul.u32.u64.compose %v597, %v596
      %v599 = vextract.low.u32 %v598
      %v600 = vextract.high.u32 %v598
      %v601 = vmul.u32.u64.compose %v597, %v592
      %v602 = vextract.low.u32 %v601
      %v603 = vextract.high.u32 %v601
      %v604 = vmul.u32 %v597, %v588
      %v605 = vadd.s32 %v600, %v602
      %vm606 = vc.u32 %v600, %v602
      %v607 = vadd.s32 %v603, 1
      %v608 = vsel %vm606, %v607, %v603
      %v609 = vadd.s32 %v604, %v608
      %v610 = vadd.s32 %v609, 536870912
      %v611 = vshrl.u32 %v610, 30
      %v612 = vshll.u32 %v611, 30
      %v613 = vsub.s32 %v609, %v612
      %vm614 = vcmp.lt.s32.totalorder %v613, 0
      %v615 = vsub.s32 0, %v613
      %v616 = vsel %vm614, %v615, %v613
      %v617 = vclz %v616
      %v618 = vsub.s32 %v617, 2
      %vm619 = vcmp.gt.s32.totalorder 0, %v618
      %v620 = vsel %vm619, 0, %v618
      %v621 = vsub.s32 32, %v620
      %v622 = vshll.u32 %v613, %v620
      %v623 = vshrl.u32 %v605, %v621
      %v624 = vor.u32 %v622, %v623
      %v625 = vsub.s32 4294967266, %v620
      %v626 = vadd.s32 %v625, 127
      %v627 = vshll.u32 %v626, 23
      %v628 = vor.u32 4788187, %v627
      %v629 = vand.u32 2147483647, %v628
      %v631 = vcvt.s32.f32 %v624
      %v632 = vmul.f32 %v631, %v629
      %v633 = vxor.u32 %v632, 2147483648
      %v634 = vsel %vm551, %v633, %v632
      %v635 = vsub.s32 4, %v611
      %v636 = vsel %vm551, %v635, %v611
      %v637 = vsel %vm550, %v545, %v634
      %v638 = vsel %vm550, 0, %v636
      %v639 = vcosq.f32.pop %v637
      %v640 = vsinq.f32.pop %v637
      %vm641 = vweird.f32 %v545
      %v642 = vadd.s32 %v638, 3
      %v643 = vand.u32 %v642, 3
      %vm644 = vcmp.lt.s32.totalorder %v643, 2
      %vm645 = vcmp.eq.s32.totalorder %v643, 0
      %v646 = vxor.u32 %v640, 2147483648
      %v647 = vsel %vm645, %v639, %v646
      %vm648 = vcmp.eq.s32.totalorder %v643, 2
      %v649 = vxor.u32 %v639, 2147483648
      %v650 = vsel %vm648, %v649, %v640
      %v651 = vsel %vm644, %v647, %v650
      %v652 = vsel %vm641, nan, %v651
      %v653 = vand.u32 2147483647, %v546
      %vm654 = vcmp.le.f32.partialorder %v653, 0.7853982
      %vm655 = vcmp.lt.s32.totalorder %v546, 0
      %v656 = vand.u32 %v546, 2139095040
      %v657 = vshrl.u32 %v656, 23
      %v658 = vsub.s32 %v657, 127
      %v659 = vand.u32 2147483647, %v546
      %v660 = vand.u32 %v659, 8388607
      %v661 = vor.u32 %v660, 8388608
      %v662 = vsub.s32 0, %v661
      %v663 = vadd.s32 %v658, 1
      %vm664 = vcmp.gt.s32.totalorder %v663, 0
      %v665 = vsel %vm664, %v663, 0
      %v666 = vshrl.u32 %v665, 5
      %v667 = vand.u32 %v665, 31
      %v668 = vsub.s32 32, %v667
      %v669 = vshrl.u32 683565275, %v668
      %v670 = vshll.u32 683565275, %v667
      %v671 = vshrl.u32 2475754826, %v668
      %v672 = vor.u32 %v670, %v671
      %v673 = vshll.u32 2475754826, %v667
      %v674 = vshrl.u32 2131351028, %v668
      %v675 = vor.u32 %v673, %v674
      %v676 = vshll.u32 2131351028, %v667
      %v677 = vshrl.u32 2102212464, %v668
      %v678 = vor.u32 %v676, %v677
      %v679 = vshll.u32 2102212464, %v667
      %v680 = vshrl.u32 920167782, %v668
      %v681 = vor.u32 %v679, %v680
      %v682 = vshll.u32 920167782, %v667
      %v683 = vshrl.u32 1326507024, %v668
      %v684 = vor.u32 %v682, %v683
      %vm685 = vcmp.lt.s32.totalorder %v666, 1
      %vm686 = vcmp.lt.s32.totalorder %v666, 2
      %vm687 = vcmp.lt.s32.totalorder %v666, 3
      %vm688 = vcmp.lt.s32.totalorder %v666, 4
      %v689 = vsel %vm685, %v669, %v672
      %v690 = vsel %vm688, %v678, 2102212464
      %v691 = vsel %vm687, %v675, %v690
      %v692 = vsel %vm686, %v689, %v691
      %v693 = vsel %vm685, %v672, %v675
      %v694 = vsel %vm688, %v681, 920167782
      %v695 = vsel %vm687, %v678, %v694
      %v696 = vsel %vm686, %v693, %v695
      %v697 = vsel %vm685, %v675, %v678
      %v698 = vsel %vm688, %v684, 1326507024
      %v699 = vsel %vm687, %v681, %v698
      %v700 = vsel %vm686, %v697, %v699
      %v701 = vshll.u32 %v661, 8
      %v702 = vmul.u32.u64.compose %v701, %v700
      %v703 = vextract.low.u32 %v702
      %v704 = vextract.high.u32 %v702
      %v705 = vmul.u32.u64.compose %v701, %v696
      %v706 = vextract.low.u32 %v705
      %v707 = vextract.high.u32 %v705
      %v708 = vmul.u32 %v701, %v692
      %v709 = vadd.s32 %v704, %v706
      %vm710 = vc.u32 %v704, %v706
      %v711 = vadd.s32 %v707, 1
      %v712 = vsel %vm710, %v711, %v707
      %v713 = vadd.s32 %v708, %v712
      %v714 = vadd.s32 %v713, 536870912
      %v715 = vshrl.u32 %v714, 30
      %v716 = vshll.u32 %v715, 30
      %v717 = vsub.s32 %v713, %v716
      %vm718 = vcmp.lt.s32.totalorder %v717, 0
      %v719 = vsub.s32 0, %v717
      %v720 = vsel %vm718, %v719, %v717
      %v721 = vclz %v720
      %v722 = vsub.s32 %v721, 2
      %vm723 = vcmp.gt.s32.totalorder 0, %v722
      %v724 = vsel %vm723, 0, %v722
      %v725 = vsub.s32 32, %v724
      %v726 = vshll.u32 %v717, %v724
      %v727 = vshrl.u32 %v709, %v725
      %v728 = vor.u32 %v726, %v727
      %v729 = vsub.s32 4294967266, %v724
      %v730 = vadd.s32 %v729, 127
      %v731 = vshll.u32 %v730, 23
      %v732 = vor.u32 4788187, %v731
      %v733 = vand.u32 2147483647, %v732
      %v735 = vcvt.s32.f32 %v728
      %v736 = vmul.f32 %v735, %v733
      %v737 = vxor.u32 %v736, 2147483648
      %v738 = vsel %vm655, %v737, %v736
      %v739 = vsub.s32 4, %v715
      %v740 = vsel %vm655, %v739, %v715
      %v741 = vsel %vm654, %v546, %v738
      %v742 = vsel %vm654, 0, %v740
      %v743 = vcosq.f32.pop %v741
      %v744 = vsinq.f32.pop %v741
      %vm745 = vweird.f32 %v546
      %v746 = vadd.s32 %v742, 3
      %v747 = vand.u32 %v746, 3
      %vm748 = vcmp.lt.s32.totalorder %v747, 2
      %vm749 = vcmp.eq.s32.totalorder %v747, 0
      %v750 = vxor.u32 %v744, 2147483648
      %v751 = vsel %vm749, %v743, %v750
      %vm752 = vcmp.eq.s32.totalorder %v747, 2
      %v753 = vxor.u32 %v743, 2147483648
      %v754 = vsel %vm752, %v753, %v744
      %v755 = vsel %vm748, %v751, %v754
      %v756 = vsel %vm745, nan, %v755
      %v757 = vand.u32 2147483647, %v547
      %vm758 = vcmp.le.f32.partialorder %v757, 0.7853982
      %vm759 = vcmp.lt.s32.totalorder %v547, 0
      %v760 = vand.u32 %v547, 2139095040
      %v761 = vshrl.u32 %v760, 23
      %v762 = vsub.s32 %v761, 127
      %v763 = vand.u32 2147483647, %v547
      %v764 = vand.u32 %v763, 8388607
      %v765 = vor.u32 %v764, 8388608
      %v766 = vsub.s32 0, %v765
      %v767 = vadd.s32 %v762, 1
      %vm768 = vcmp.gt.s32.totalorder %v767, 0
      %v769 = vsel %vm768, %v767, 0
      %v770 = vshrl.u32 %v769, 5
      %v771 = vand.u32 %v769, 31
      %v772 = vsub.s32 32, %v771
      %v773 = vshrl.u32 683565275, %v772
      %v774 = vshll.u32 683565275, %v771
      %v775 = vshrl.u32 2475754826, %v772
      %v776 = vor.u32 %v774, %v775
      %v777 = vshll.u32 2475754826, %v771
      %v778 = vshrl.u32 2131351028, %v772
      %v779 = vor.u32 %v777, %v778
      %v780 = vshll.u32 2131351028, %v771
      %v781 = vshrl.u32 2102212464, %v772
      %v782 = vor.u32 %v780, %v781
      %v783 = vshll.u32 2102212464, %v771
      %v784 = vshrl.u32 920167782, %v772
      %v785 = vor.u32 %v783, %v784
      %v786 = vshll.u32 920167782, %v771
      %v787 = vshrl.u32 1326507024, %v772
      %v788 = vor.u32 %v786, %v787
      %vm789 = vcmp.lt.s32.totalorder %v770, 1
      %vm790 = vcmp.lt.s32.totalorder %v770, 2
      %vm791 = vcmp.lt.s32.totalorder %v770, 3
      %vm792 = vcmp.lt.s32.totalorder %v770, 4
      %v793 = vsel %vm789, %v773, %v776
      %v794 = vsel %vm792, %v782, 2102212464
      %v795 = vsel %vm791, %v779, %v794
      %v796 = vsel %vm790, %v793, %v795
      %v797 = vsel %vm789, %v776, %v779
      %v798 = vsel %vm792, %v785, 920167782
      %v799 = vsel %vm791, %v782, %v798
      %v800 = vsel %vm790, %v797, %v799
      %v801 = vsel %vm789, %v779, %v782
      %v802 = vsel %vm792, %v788, 1326507024
      %v803 = vsel %vm791, %v785, %v802
      %v804 = vsel %vm790, %v801, %v803
      %v805 = vshll.u32 %v765, 8
      %v806 = vmul.u32.u64.compose %v805, %v804
      %v807 = vextract.low.u32 %v806
      %v808 = vextract.high.u32 %v806
      %v809 = vmul.u32.u64.compose %v805, %v800
      %v810 = vextract.low.u32 %v809
      %v811 = vextract.high.u32 %v809
      %v812 = vmul.u32 %v805, %v796
      %v813 = vadd.s32 %v808, %v810
      %vm814 = vc.u32 %v808, %v810
      %v815 = vadd.s32 %v811, 1
      %v816 = vsel %vm814, %v815, %v811
      %v817 = vadd.s32 %v812, %v816
      %v818 = vadd.s32 %v817, 536870912
      %v819 = vshrl.u32 %v818, 30
      %v820 = vshll.u32 %v819, 30
      %v821 = vsub.s32 %v817, %v820
      %vm822 = vcmp.lt.s32.totalorder %v821, 0
      %v823 = vsub.s32 0, %v821
      %v824 = vsel %vm822, %v823, %v821
      %v825 = vclz %v824
      %v826 = vsub.s32 %v825, 2
      %vm827 = vcmp.gt.s32.totalorder 0, %v826
      %v828 = vsel %vm827, 0, %v826
      %v829 = vsub.s32 32, %v828
      %v830 = vshll.u32 %v821, %v828
      %v831 = vshrl.u32 %v813, %v829
      %v832 = vor.u32 %v830, %v831
      %v833 = vsub.s32 4294967266, %v828
      %v834 = vadd.s32 %v833, 127
      %v835 = vshll.u32 %v834, 23
      %v836 = vor.u32 4788187, %v835
      %v837 = vand.u32 2147483647, %v836
      %v839 = vcvt.s32.f32 %v832
      %v840 = vmul.f32 %v839, %v837
      %v841 = vxor.u32 %v840, 2147483648
      %v842 = vsel %vm759, %v841, %v840
      %v843 = vsub.s32 4, %v819
      %v844 = vsel %vm759, %v843, %v819
      %v845 = vsel %vm758, %v547, %v842
      %v846 = vsel %vm758, 0, %v844
      %v847 = vcosq.f32.pop %v845
      %v848 = vsinq.f32.pop %v845
      %vm849 = vweird.f32 %v547
      %v850 = vadd.s32 %v846, 3
      %v851 = vand.u32 %v850, 3
      %vm852 = vcmp.lt.s32.totalorder %v851, 2
      %vm853 = vcmp.eq.s32.totalorder %v851, 0
      %v854 = vxor.u32 %v848, 2147483648
      %v855 = vsel %vm853, %v847, %v854
      %vm856 = vcmp.eq.s32.totalorder %v851, 2
      %v857 = vxor.u32 %v847, 2147483648
      %v858 = vsel %vm856, %v857, %v848
      %v859 = vsel %vm852, %v855, %v858
      %v860 = vsel %vm849, nan, %v859
      %v861 = vand.u32 2147483647, %v548
      %vm862 = vcmp.le.f32.partialorder %v861, 0.7853982
      %vm863 = vcmp.lt.s32.totalorder %v548, 0
      %v864 = vand.u32 %v548, 2139095040
      %v865 = vshrl.u32 %v864, 23
      %v866 = vsub.s32 %v865, 127
      %v867 = vand.u32 2147483647, %v548
      %v868 = vand.u32 %v867, 8388607
      %v869 = vor.u32 %v868, 8388608
      %v870 = vsub.s32 0, %v869
      %v871 = vadd.s32 %v866, 1
      %vm872 = vcmp.gt.s32.totalorder %v871, 0
      %v873 = vsel %vm872, %v871, 0
      %v874 = vshrl.u32 %v873, 5
      %v875 = vand.u32 %v873, 31
      %v876 = vsub.s32 32, %v875
      %v877 = vshrl.u32 683565275, %v876
      %v878 = vshll.u32 683565275, %v875
      %v879 = vshrl.u32 2475754826, %v876
      %v880 = vor.u32 %v878, %v879
      %v881 = vshll.u32 2475754826, %v875
      %v882 = vshrl.u32 2131351028, %v876
      %v883 = vor.u32 %v881, %v882
      %v884 = vshll.u32 2131351028, %v875
      %v885 = vshrl.u32 2102212464, %v876
      %v886 = vor.u32 %v884, %v885
      %v887 = vshll.u32 2102212464, %v875
      %v888 = vshrl.u32 920167782, %v876
      %v889 = vor.u32 %v887, %v888
      %v890 = vshll.u32 920167782, %v875
      %v891 = vshrl.u32 1326507024, %v876
      %v892 = vor.u32 %v890, %v891
      %vm893 = vcmp.lt.s32.totalorder %v874, 1
      %vm894 = vcmp.lt.s32.totalorder %v874, 2
      %vm895 = vcmp.lt.s32.totalorder %v874, 3
      %vm896 = vcmp.lt.s32.totalorder %v874, 4
      %v897 = vsel %vm893, %v877, %v880
      %v898 = vsel %vm896, %v886, 2102212464
      %v899 = vsel %vm895, %v883, %v898
      %v900 = vsel %vm894, %v897, %v899
      %v901 = vsel %vm893, %v880, %v883
      %v902 = vsel %vm896, %v889, 920167782
      %v903 = vsel %vm895, %v886, %v902
      %v904 = vsel %vm894, %v901, %v903
      %v905 = vsel %vm893, %v883, %v886
      %v906 = vsel %vm896, %v892, 1326507024
      %v907 = vsel %vm895, %v889, %v906
      %v908 = vsel %vm894, %v905, %v907
      %v909 = vshll.u32 %v869, 8
      %v910 = vmul.u32.u64.compose %v909, %v908
      %v911 = vextract.low.u32 %v910
      %v912 = vextract.high.u32 %v910
      %v913 = vmul.u32.u64.compose %v909, %v904
      %v914 = vextract.low.u32 %v913
      %v915 = vextract.high.u32 %v913
      %v916 = vmul.u32 %v909, %v900
      %v917 = vadd.s32 %v912, %v914
      %vm918 = vc.u32 %v912, %v914
      %v919 = vadd.s32 %v915, 1
      %v920 = vsel %vm918, %v919, %v915
      %v921 = vadd.s32 %v916, %v920
      %v922 = vadd.s32 %v921, 536870912
      %v923 = vshrl.u32 %v922, 30
      %v924 = vshll.u32 %v923, 30
      %v925 = vsub.s32 %v921, %v924
      %vm926 = vcmp.lt.s32.totalorder %v925, 0
      %v927 = vsub.s32 0, %v925
      %v928 = vsel %vm926, %v927, %v925
      %v929 = vclz %v928
      %v930 = vsub.s32 %v929, 2
      %vm931 = vcmp.gt.s32.totalorder 0, %v930
      %v932 = vsel %vm931, 0, %v930
      %v933 = vsub.s32 32, %v932
      %v934 = vshll.u32 %v925, %v932
      %v935 = vshrl.u32 %v917, %v933
      %v936 = vor.u32 %v934, %v935
      %v937 = vsub.s32 4294967266, %v932
      %v938 = vadd.s32 %v937, 127
      %v939 = vshll.u32 %v938, 23
      %v940 = vor.u32 4788187, %v939
      %v941 = vand.u32 2147483647, %v940
      %v943 = vcvt.s32.f32 %v936
      %v944 = vmul.f32 %v943, %v941
      %v945 = vxor.u32 %v944, 2147483648
      %v946 = vsel %vm863, %v945, %v944
      %v947 = vsub.s32 4, %v923
      %v948 = vsel %vm863, %v947, %v923
      %v949 = vsel %vm862, %v548, %v946
      %v950 = vsel %vm862, 0, %v948
      %v951 = vcosq.f32.pop %v949
      %v952 = vsinq.f32.pop %v949
      %vm953 = vweird.f32 %v548
      %v954 = vadd.s32 %v950, 3
      %v955 = vand.u32 %v954, 3
      %vm956 = vcmp.lt.s32.totalorder %v955, 2
      %vm957 = vcmp.eq.s32.totalorder %v955, 0
      %v958 = vxor.u32 %v952, 2147483648
      %v959 = vsel %vm957, %v951, %v958
      %vm960 = vcmp.eq.s32.totalorder %v955, 2
      %v961 = vxor.u32 %v951, 2147483648
      %v962 = vsel %vm960, %v961, %v952
      %v963 = vsel %vm956, %v959, %v962
      %v964 = vsel %vm953, nan, %v963
      %v965 = vmul.f32 %v540, %v652
      %v966 = vmul.f32 %v541, %v756
      %v967 = vmul.f32 %v542, %v860
      %v968 = vmul.f32 %v543, %v964
      %973 = vrot.lane.b32.xlu0 %v965, 96
      %v974 = vpop.permute.xlu0 %973
      %975 = vrot.lane.b32.xlu0 %v966, 96
      %v976 = vpop.permute.xlu0 %975
      %977 = vrot.lane.b32.xlu0 %v967, 96
      %v978 = vpop.permute.xlu0 %977
      %979 = vrot.lane.b32.xlu0 %v968, 96
      %v980 = vpop.permute.xlu0 %979
      %v985 = vadd.f32 %v965, %v974
      %v986 = vadd.f32 %v966, %v976
      %v987 = vadd.f32 %v967, %v978
      %v988 = vadd.f32 %v968, %v980
      %989 = vrot.lane.b32.xlu0 %v965, 64
      %v990 = vpop.permute.xlu0 %989
      %991 = vrot.lane.b32.xlu0 %v966, 64
      %v992 = vpop.permute.xlu0 %991
      %993 = vrot.lane.b32.xlu0 %v967, 64
      %v994 = vpop.permute.xlu0 %993
      %995 = vrot.lane.b32.xlu0 %v968, 64
      %v996 = vpop.permute.xlu0 %995
      %v1001 = vadd.f32 %v985, %v990
      %v1002 = vadd.f32 %v986, %v992
      %v1003 = vadd.f32 %v987, %v994
      %v1004 = vadd.f32 %v988, %v996
      %1009 = vrot.lane.b32.xlu0 %v1001, 32
      %v1010 = vpop.permute.xlu0 %1009
      %1011 = vrot.lane.b32.xlu0 %v1002, 32
      %v1012 = vpop.permute.xlu0 %1011
      %1013 = vrot.lane.b32.xlu0 %v1003, 32
      %v1014 = vpop.permute.xlu0 %1013
      %1015 = vrot.lane.b32.xlu0 %v1004, 32
      %v1016 = vpop.permute.xlu0 %1015
      %v1021 = vsel %vm529, %v535, %v1010
      %v1022 = vsel %vm529, %v536, %v1012
      %v1023 = vsel %vm529, %v537, %v1014
      %v1024 = vsel %vm529, %v538, %v1016
      %s1025 = scalar_lea.vmem %s2, %s41
      %v1026 = vld [vmem:[%s1025] sm:$0xff]
      %v1027 = vld [vmem:[%s1025 + $0x8] sm:$0xff]
      %v1028 = vld [vmem:[%s1025 + $0x10] sm:$0xff]
      %v1029 = vld [vmem:[%s1025 + $0x18] sm:$0xff]
      %1034 = vrot.lane.b32.xlu0 %v530, 64
      %v1035 = vpop.permute.xlu0 %1034
      %1036 = vrot.lane.b32.xlu0 %v531, 64
      %v1037 = vpop.permute.xlu0 %1036
      %1038 = vrot.lane.b32.xlu0 %v532, 64
      %v1039 = vpop.permute.xlu0 %1038
      %1040 = vrot.lane.b32.xlu0 %v533, 64
      %v1041 = vpop.permute.xlu0 %1040
      %vm1046 = vcmask 523264
      %v1047 = vsel %vm1046, %v530, %v1035
      %v1048 = vsel %vm1046, %v531, %v1037
      %v1049 = vsel %vm1046, %v532, %v1039
      %v1050 = vsel %vm1046, %v533, %v1041
      %1055 = vrot.lane.b32.xlu0 %v1026, 64
      %v1056 = vpop.permute.xlu0 %1055
      %1057 = vrot.lane.b32.xlu0 %v1027, 64
      %v1058 = vpop.permute.xlu0 %1057
      %1059 = vrot.lane.b32.xlu0 %v1028, 64
      %v1060 = vpop.permute.xlu0 %1059
      %1061 = vrot.lane.b32.xlu0 %v1029, 64
      %v1062 = vpop.permute.xlu0 %1061
      %v1067 = vsel %vm1046, %v1026, %v1056
      %v1068 = vsel %vm1046, %v1027, %v1058
      %v1069 = vsel %vm1046, %v1028, %v1060
      %v1070 = vsel %vm1046, %v1029, %v1062
      %1075 = vrot.lane.b32.xlu0 %v1021, 64
      %v1076 = vpop.permute.xlu0 %1075
      %1077 = vrot.lane.b32.xlu0 %v1022, 64
      %v1078 = vpop.permute.xlu0 %1077
      %1079 = vrot.lane.b32.xlu0 %v1023, 64
      %v1080 = vpop.permute.xlu0 %1079
      %1081 = vrot.lane.b32.xlu0 %v1024, 64
      %v1082 = vpop.permute.xlu0 %1081
      %v1087 = vsel %vm1046, %v1021, %v1076
      %v1088 = vsel %vm1046, %v1022, %v1078
      %v1089 = vsel %vm1046, %v1023, %v1080
      %v1090 = vsel %vm1046, %v1024, %v1082
      %v1091 = vlaneseq
      %v1092 = vshrl.u32 %v1091, 7
      %v1093 = vsub.s32 0, %v1092
      %v1094 = vrot.slane %v30, %v1093
      %v1095 = vmul.f32 %v1047, %v1094
      %v1096 = vmul.f32 %v1048, %v1094
      %v1097 = vmul.f32 %v1049, %v1094
      %v1098 = vmul.f32 %v1050, %v1094
      %v1099 = vlaneseq
      %v1100 = vshrl.u32 %v1099, 7
      %v1101 = vsub.s32 0, %v1100
      %v1102 = vrot.slane %v31, %v1101
      %v1103 = vmul.f32 %v1067, %v1102
      %v1104 = vmul.f32 %v1068, %v1102
      %v1105 = vmul.f32 %v1069, %v1102
      %v1106 = vmul.f32 %v1070, %v1102
      %v1107 = vadd.f32 %v1095, %v1103
      %v1108 = vadd.f32 %v1096, %v1104
      %v1109 = vadd.f32 %v1097, %v1105
      %v1110 = vadd.f32 %v1098, %v1106
      %v1111 = vlaneseq
      %v1112 = vshrl.u32 %v1111, 7
      %v1113 = vsub.s32 0, %v1112
      %v1114 = vrot.slane %v32, %v1113
      %v1115 = vmul.f32 %v1087, %v1114
      %v1116 = vmul.f32 %v1088, %v1114
      %v1117 = vmul.f32 %v1089, %v1114
      %v1118 = vmul.f32 %v1090, %v1114
      %v1119 = vadd.f32 %v1107, %v1115
      %v1120 = vadd.f32 %v1108, %v1116
      %v1121 = vadd.f32 %v1109, %v1117
      %v1122 = vadd.f32 %v1110, %v1118
      %v1123 = vlaneseq
      %v1124 = vshrl.u32 %v1123, 7
      %v1125 = vsub.s32 0, %v1124
      %v1126 = vrot.slane %v33, %v1125
      %v1127 = vadd.f32 %v1119, %v1126
      %v1128 = vadd.f32 %v1120, %v1126
      %v1129 = vadd.f32 %v1121, %v1126
      %v1130 = vadd.f32 %v1122, %v1126
      %v1131 = vmax.f32 %v1127, 0.0
      %v1132 = vmax.f32 %v1128, 0.0
      %v1133 = vmax.f32 %v1129, 0.0
      %v1134 = vmax.f32 %v1130, 0.0
      %v1135 = vlaneseq
      %v1136 = vshrl.u32 %v1135, 7
      %v1137 = vsub.s32 0, %v1136
      %v1138 = vrot.slane %v34, %v1137
      %v1139 = vmul.f32 %v1131, %v1138
      %v1140 = vmul.f32 %v1132, %v1138
      %v1141 = vmul.f32 %v1133, %v1138
      %v1142 = vmul.f32 %v1134, %v1138
      %v1143 = vadd.f32 %v1139, 0.0
      %v1144 = vadd.f32 %v1140, 0.0
      %v1145 = vadd.f32 %v1141, 0.0
      %v1146 = vadd.f32 %v1142, 0.0
      %v1147 = vlaneseq
      %v1148 = vshrl.u32 %v1147, 7
      %v1149 = vsub.s32 1, %v1148
      %v1150 = vrot.slane %v30, %v1149
      %v1151 = vmul.f32 %v1047, %v1150
      %v1152 = vmul.f32 %v1048, %v1150
      %v1153 = vmul.f32 %v1049, %v1150
      %v1154 = vmul.f32 %v1050, %v1150
      %v1155 = vlaneseq
      %v1156 = vshrl.u32 %v1155, 7
      %v1157 = vsub.s32 1, %v1156
      %v1158 = vrot.slane %v31, %v1157
      %v1159 = vmul.f32 %v1067, %v1158
      %v1160 = vmul.f32 %v1068, %v1158
      %v1161 = vmul.f32 %v1069, %v1158
      %v1162 = vmul.f32 %v1070, %v1158
      %v1163 = vadd.f32 %v1151, %v1159
      %v1164 = vadd.f32 %v1152, %v1160
      %v1165 = vadd.f32 %v1153, %v1161
      %v1166 = vadd.f32 %v1154, %v1162
      %v1167 = vlaneseq
      %v1168 = vshrl.u32 %v1167, 7
      %v1169 = vsub.s32 1, %v1168
      %v1170 = vrot.slane %v32, %v1169
      %v1171 = vmul.f32 %v1087, %v1170
      %v1172 = vmul.f32 %v1088, %v1170
      %v1173 = vmul.f32 %v1089, %v1170
      %v1174 = vmul.f32 %v1090, %v1170
      %v1175 = vadd.f32 %v1163, %v1171
      %v1176 = vadd.f32 %v1164, %v1172
      %v1177 = vadd.f32 %v1165, %v1173
      %v1178 = vadd.f32 %v1166, %v1174
      %v1179 = vlaneseq
      %v1180 = vshrl.u32 %v1179, 7
      %v1181 = vsub.s32 1, %v1180
      %v1182 = vrot.slane %v33, %v1181
      %v1183 = vadd.f32 %v1175, %v1182
      %v1184 = vadd.f32 %v1176, %v1182
      %v1185 = vadd.f32 %v1177, %v1182
      %v1186 = vadd.f32 %v1178, %v1182
      %v1187 = vmax.f32 %v1183, 0.0
      %v1188 = vmax.f32 %v1184, 0.0
      %v1189 = vmax.f32 %v1185, 0.0
      %v1190 = vmax.f32 %v1186, 0.0
      %v1191 = vlaneseq
      %v1192 = vshrl.u32 %v1191, 7
      %v1193 = vsub.s32 1, %v1192
      %v1194 = vrot.slane %v34, %v1193
      %v1195 = vmul.f32 %v1187, %v1194
      %v1196 = vmul.f32 %v1188, %v1194
      %v1197 = vmul.f32 %v1189, %v1194
      %v1198 = vmul.f32 %v1190, %v1194
      %v1199 = vadd.f32 %v1143, %v1195
      %v1200 = vadd.f32 %v1144, %v1196
      %v1201 = vadd.f32 %v1145, %v1197
      %v1202 = vadd.f32 %v1146, %v1198
      %v1203 = vlaneseq
      %v1204 = vshrl.u32 %v1203, 7
      %v1205 = vsub.s32 2, %v1204
      %v1206 = vrot.slane %v30, %v1205
      %v1207 = vmul.f32 %v1047, %v1206
      %v1208 = vmul.f32 %v1048, %v1206
      %v1209 = vmul.f32 %v1049, %v1206
      %v1210 = vmul.f32 %v1050, %v1206
      %v1211 = vlaneseq
      %v1212 = vshrl.u32 %v1211, 7
      %v1213 = vsub.s32 2, %v1212
      %v1214 = vrot.slane %v31, %v1213
      %v1215 = vmul.f32 %v1067, %v1214
      %v1216 = vmul.f32 %v1068, %v1214
      %v1217 = vmul.f32 %v1069, %v1214
      %v1218 = vmul.f32 %v1070, %v1214
      %v1219 = vadd.f32 %v1207, %v1215
      %v1220 = vadd.f32 %v1208, %v1216
      %v1221 = vadd.f32 %v1209, %v1217
      %v1222 = vadd.f32 %v1210, %v1218
      %v1223 = vlaneseq
      %v1224 = vshrl.u32 %v1223, 7
      %v1225 = vsub.s32 2, %v1224
      %v1226 = vrot.slane %v32, %v1225
      %v1227 = vmul.f32 %v1087, %v1226
      %v1228 = vmul.f32 %v1088, %v1226
      %v1229 = vmul.f32 %v1089, %v1226
      %v1230 = vmul.f32 %v1090, %v1226
      %v1231 = vadd.f32 %v1219, %v1227
      %v1232 = vadd.f32 %v1220, %v1228
      %v1233 = vadd.f32 %v1221, %v1229
      %v1234 = vadd.f32 %v1222, %v1230
      %v1235 = vlaneseq
      %v1236 = vshrl.u32 %v1235, 7
      %v1237 = vsub.s32 2, %v1236
      %v1238 = vrot.slane %v33, %v1237
      %v1239 = vadd.f32 %v1231, %v1238
      %v1240 = vadd.f32 %v1232, %v1238
      %v1241 = vadd.f32 %v1233, %v1238
      %v1242 = vadd.f32 %v1234, %v1238
      %v1243 = vmax.f32 %v1239, 0.0
      %v1244 = vmax.f32 %v1240, 0.0
      %v1245 = vmax.f32 %v1241, 0.0
      %v1246 = vmax.f32 %v1242, 0.0
      %v1247 = vlaneseq
      %v1248 = vshrl.u32 %v1247, 7
      %v1249 = vsub.s32 2, %v1248
      %v1250 = vrot.slane %v34, %v1249
      %v1251 = vmul.f32 %v1243, %v1250
      %v1252 = vmul.f32 %v1244, %v1250
      %v1253 = vmul.f32 %v1245, %v1250
      %v1254 = vmul.f32 %v1246, %v1250
      %v1255 = vadd.f32 %v1199, %v1251
      %v1256 = vadd.f32 %v1200, %v1252
      %v1257 = vadd.f32 %v1201, %v1253
      %v1258 = vadd.f32 %v1202, %v1254
      %v1259 = vlaneseq
      %v1260 = vshrl.u32 %v1259, 7
      %v1261 = vsub.s32 3, %v1260
      %v1262 = vrot.slane %v30, %v1261
      %v1263 = vmul.f32 %v1047, %v1262
      %v1264 = vmul.f32 %v1048, %v1262
      %v1265 = vmul.f32 %v1049, %v1262
      %v1266 = vmul.f32 %v1050, %v1262
      %v1267 = vlaneseq
      %v1268 = vshrl.u32 %v1267, 7
      %v1269 = vsub.s32 3, %v1268
      %v1270 = vrot.slane %v31, %v1269
      %v1271 = vmul.f32 %v1067, %v1270
      %v1272 = vmul.f32 %v1068, %v1270
      %v1273 = vmul.f32 %v1069, %v1270
      %v1274 = vmul.f32 %v1070, %v1270
      %v1275 = vadd.f32 %v1263, %v1271
      %v1276 = vadd.f32 %v1264, %v1272
      %v1277 = vadd.f32 %v1265, %v1273
      %v1278 = vadd.f32 %v1266, %v1274
      %v1279 = vlaneseq
      %v1280 = vshrl.u32 %v1279, 7
      %v1281 = vsub.s32 3, %v1280
      %v1282 = vrot.slane %v32, %v1281
      %v1283 = vmul.f32 %v1087, %v1282
      %v1284 = vmul.f32 %v1088, %v1282
      %v1285 = vmul.f32 %v1089, %v1282
      %v1286 = vmul.f32 %v1090, %v1282
      %v1287 = vadd.f32 %v1275, %v1283
      %v1288 = vadd.f32 %v1276, %v1284
      %v1289 = vadd.f32 %v1277, %v1285
      %v1290 = vadd.f32 %v1278, %v1286
      %v1291 = vlaneseq
      %v1292 = vshrl.u32 %v1291, 7
      %v1293 = vsub.s32 3, %v1292
      %v1294 = vrot.slane %v33, %v1293
      %v1295 = vadd.f32 %v1287, %v1294
      %v1296 = vadd.f32 %v1288, %v1294
      %v1297 = vadd.f32 %v1289, %v1294
      %v1298 = vadd.f32 %v1290, %v1294
      %v1299 = vmax.f32 %v1295, 0.0
      %v1300 = vmax.f32 %v1296, 0.0
      %v1301 = vmax.f32 %v1297, 0.0
      %v1302 = vmax.f32 %v1298, 0.0
      %v1303 = vlaneseq
      %v1304 = vshrl.u32 %v1303, 7
      %v1305 = vsub.s32 3, %v1304
      %v1306 = vrot.slane %v34, %v1305
      %v1307 = vmul.f32 %v1299, %v1306
      %v1308 = vmul.f32 %v1300, %v1306
      %v1309 = vmul.f32 %v1301, %v1306
      %v1310 = vmul.f32 %v1302, %v1306
      %v1311 = vadd.f32 %v1255, %v1307
      %v1312 = vadd.f32 %v1256, %v1308
      %v1313 = vadd.f32 %v1257, %v1309
      %v1314 = vadd.f32 %v1258, %v1310
      %v1315 = vlaneseq
      %v1316 = vshrl.u32 %v1315, 7
      %v1317 = vsub.s32 4, %v1316
      %v1318 = vrot.slane %v30, %v1317
      %v1319 = vmul.f32 %v1047, %v1318
      %v1320 = vmul.f32 %v1048, %v1318
      %v1321 = vmul.f32 %v1049, %v1318
      %v1322 = vmul.f32 %v1050, %v1318
      %v1323 = vlaneseq
      %v1324 = vshrl.u32 %v1323, 7
      %v1325 = vsub.s32 4, %v1324
      %v1326 = vrot.slane %v31, %v1325
      %v1327 = vmul.f32 %v1067, %v1326
      %v1328 = vmul.f32 %v1068, %v1326
      %v1329 = vmul.f32 %v1069, %v1326
      %v1330 = vmul.f32 %v1070, %v1326
      %v1331 = vadd.f32 %v1319, %v1327
      %v1332 = vadd.f32 %v1320, %v1328
      %v1333 = vadd.f32 %v1321, %v1329
      %v1334 = vadd.f32 %v1322, %v1330
      %v1335 = vlaneseq
      %v1336 = vshrl.u32 %v1335, 7
      %v1337 = vsub.s32 4, %v1336
      %v1338 = vrot.slane %v32, %v1337
      %v1339 = vmul.f32 %v1087, %v1338
      %v1340 = vmul.f32 %v1088, %v1338
      %v1341 = vmul.f32 %v1089, %v1338
      %v1342 = vmul.f32 %v1090, %v1338
      %v1343 = vadd.f32 %v1331, %v1339
      %v1344 = vadd.f32 %v1332, %v1340
      %v1345 = vadd.f32 %v1333, %v1341
      %v1346 = vadd.f32 %v1334, %v1342
      %v1347 = vlaneseq
      %v1348 = vshrl.u32 %v1347, 7
      %v1349 = vsub.s32 4, %v1348
      %v1350 = vrot.slane %v33, %v1349
      %v1351 = vadd.f32 %v1343, %v1350
      %v1352 = vadd.f32 %v1344, %v1350
      %v1353 = vadd.f32 %v1345, %v1350
      %v1354 = vadd.f32 %v1346, %v1350
      %v1355 = vmax.f32 %v1351, 0.0
      %v1356 = vmax.f32 %v1352, 0.0
      %v1357 = vmax.f32 %v1353, 0.0
      %v1358 = vmax.f32 %v1354, 0.0
      %v1359 = vlaneseq
      %v1360 = vshrl.u32 %v1359, 7
      %v1361 = vsub.s32 4, %v1360
      %v1362 = vrot.slane %v34, %v1361
      %v1363 = vmul.f32 %v1355, %v1362
      %v1364 = vmul.f32 %v1356, %v1362
      %v1365 = vmul.f32 %v1357, %v1362
      %v1366 = vmul.f32 %v1358, %v1362
      %v1367 = vadd.f32 %v1311, %v1363
      %v1368 = vadd.f32 %v1312, %v1364
      %v1369 = vadd.f32 %v1313, %v1365
      %v1370 = vadd.f32 %v1314, %v1366
      %v1371 = vlaneseq
      %v1372 = vshrl.u32 %v1371, 7
      %v1373 = vsub.s32 5, %v1372
      %v1374 = vrot.slane %v30, %v1373
      %v1375 = vmul.f32 %v1047, %v1374
      %v1376 = vmul.f32 %v1048, %v1374
      %v1377 = vmul.f32 %v1049, %v1374
      %v1378 = vmul.f32 %v1050, %v1374
      %v1379 = vlaneseq
      %v1380 = vshrl.u32 %v1379, 7
      %v1381 = vsub.s32 5, %v1380
      %v1382 = vrot.slane %v31, %v1381
      %v1383 = vmul.f32 %v1067, %v1382
      %v1384 = vmul.f32 %v1068, %v1382
      %v1385 = vmul.f32 %v1069, %v1382
      %v1386 = vmul.f32 %v1070, %v1382
      %v1387 = vadd.f32 %v1375, %v1383
      %v1388 = vadd.f32 %v1376, %v1384
      %v1389 = vadd.f32 %v1377, %v1385
      %v1390 = vadd.f32 %v1378, %v1386
      %v1391 = vlaneseq
      %v1392 = vshrl.u32 %v1391, 7
      %v1393 = vsub.s32 5, %v1392
      %v1394 = vrot.slane %v32, %v1393
      %v1395 = vmul.f32 %v1087, %v1394
      %v1396 = vmul.f32 %v1088, %v1394
      %v1397 = vmul.f32 %v1089, %v1394
      %v1398 = vmul.f32 %v1090, %v1394
      %v1399 = vadd.f32 %v1387, %v1395
      %v1400 = vadd.f32 %v1388, %v1396
      %v1401 = vadd.f32 %v1389, %v1397
      %v1402 = vadd.f32 %v1390, %v1398
      %v1403 = vlaneseq
      %v1404 = vshrl.u32 %v1403, 7
      %v1405 = vsub.s32 5, %v1404
      %v1406 = vrot.slane %v33, %v1405
      %v1407 = vadd.f32 %v1399, %v1406
      %v1408 = vadd.f32 %v1400, %v1406
      %v1409 = vadd.f32 %v1401, %v1406
      %v1410 = vadd.f32 %v1402, %v1406
      %v1411 = vmax.f32 %v1407, 0.0
      %v1412 = vmax.f32 %v1408, 0.0
      %v1413 = vmax.f32 %v1409, 0.0
      %v1414 = vmax.f32 %v1410, 0.0
      %v1415 = vlaneseq
      %v1416 = vshrl.u32 %v1415, 7
      %v1417 = vsub.s32 5, %v1416
      %v1418 = vrot.slane %v34, %v1417
      %v1419 = vmul.f32 %v1411, %v1418
      %v1420 = vmul.f32 %v1412, %v1418
      %v1421 = vmul.f32 %v1413, %v1418
      %v1422 = vmul.f32 %v1414, %v1418
      %v1423 = vadd.f32 %v1367, %v1419
      %v1424 = vadd.f32 %v1368, %v1420
      %v1425 = vadd.f32 %v1369, %v1421
      %v1426 = vadd.f32 %v1370, %v1422
      %v1427 = vlaneseq
      %v1428 = vshrl.u32 %v1427, 7
      %v1429 = vsub.s32 6, %v1428
      %v1430 = vrot.slane %v30, %v1429
      %v1431 = vmul.f32 %v1047, %v1430
      %v1432 = vmul.f32 %v1048, %v1430
      %v1433 = vmul.f32 %v1049, %v1430
      %v1434 = vmul.f32 %v1050, %v1430
      %v1435 = vlaneseq
      %v1436 = vshrl.u32 %v1435, 7
      %v1437 = vsub.s32 6, %v1436
      %v1438 = vrot.slane %v31, %v1437
      %v1439 = vmul.f32 %v1067, %v1438
      %v1440 = vmul.f32 %v1068, %v1438
      %v1441 = vmul.f32 %v1069, %v1438
      %v1442 = vmul.f32 %v1070, %v1438
      %v1443 = vadd.f32 %v1431, %v1439
      %v1444 = vadd.f32 %v1432, %v1440
      %v1445 = vadd.f32 %v1433, %v1441
      %v1446 = vadd.f32 %v1434, %v1442
      %v1447 = vlaneseq
      %v1448 = vshrl.u32 %v1447, 7
      %v1449 = vsub.s32 6, %v1448
      %v1450 = vrot.slane %v32, %v1449
      %v1451 = vmul.f32 %v1087, %v1450
      %v1452 = vmul.f32 %v1088, %v1450
      %v1453 = vmul.f32 %v1089, %v1450
      %v1454 = vmul.f32 %v1090, %v1450
      %v1455 = vadd.f32 %v1443, %v1451
      %v1456 = vadd.f32 %v1444, %v1452
      %v1457 = vadd.f32 %v1445, %v1453
      %v1458 = vadd.f32 %v1446, %v1454
      %v1459 = vlaneseq
      %v1460 = vshrl.u32 %v1459, 7
      %v1461 = vsub.s32 6, %v1460
      %v1462 = vrot.slane %v33, %v1461
      %v1463 = vadd.f32 %v1455, %v1462
      %v1464 = vadd.f32 %v1456, %v1462
      %v1465 = vadd.f32 %v1457, %v1462
      %v1466 = vadd.f32 %v1458, %v1462
      %v1467 = vmax.f32 %v1463, 0.0
      %v1468 = vmax.f32 %v1464, 0.0
      %v1469 = vmax.f32 %v1465, 0.0
      %v1470 = vmax.f32 %v1466, 0.0
      %v1471 = vlaneseq
      %v1472 = vshrl.u32 %v1471, 7
      %v1473 = vsub.s32 6, %v1472
      %v1474 = vrot.slane %v34, %v1473
      %v1475 = vmul.f32 %v1467, %v1474
      %v1476 = vmul.f32 %v1468, %v1474
      %v1477 = vmul.f32 %v1469, %v1474
      %v1478 = vmul.f32 %v1470, %v1474
      %v1479 = vadd.f32 %v1423, %v1475
      %v1480 = vadd.f32 %v1424, %v1476
      %v1481 = vadd.f32 %v1425, %v1477
      %v1482 = vadd.f32 %v1426, %v1478
      %v1483 = vlaneseq
      %v1484 = vshrl.u32 %v1483, 7
      %v1485 = vsub.s32 7, %v1484
      %v1486 = vrot.slane %v30, %v1485
      %v1487 = vmul.f32 %v1047, %v1486
      %v1488 = vmul.f32 %v1048, %v1486
      %v1489 = vmul.f32 %v1049, %v1486
      %v1490 = vmul.f32 %v1050, %v1486
      %v1491 = vlaneseq
      %v1492 = vshrl.u32 %v1491, 7
      %v1493 = vsub.s32 7, %v1492
      %v1494 = vrot.slane %v31, %v1493
      %v1495 = vmul.f32 %v1067, %v1494
      %v1496 = vmul.f32 %v1068, %v1494
      %v1497 = vmul.f32 %v1069, %v1494
      %v1498 = vmul.f32 %v1070, %v1494
      %v1499 = vadd.f32 %v1487, %v1495
      %v1500 = vadd.f32 %v1488, %v1496
      %v1501 = vadd.f32 %v1489, %v1497
      %v1502 = vadd.f32 %v1490, %v1498
      %v1503 = vlaneseq
      %v1504 = vshrl.u32 %v1503, 7
      %v1505 = vsub.s32 7, %v1504
      %v1506 = vrot.slane %v32, %v1505
      %v1507 = vmul.f32 %v1087, %v1506
      %v1508 = vmul.f32 %v1088, %v1506
      %v1509 = vmul.f32 %v1089, %v1506
      %v1510 = vmul.f32 %v1090, %v1506
      %v1511 = vadd.f32 %v1499, %v1507
      %v1512 = vadd.f32 %v1500, %v1508
      %v1513 = vadd.f32 %v1501, %v1509
      %v1514 = vadd.f32 %v1502, %v1510
      %v1515 = vlaneseq
      %v1516 = vshrl.u32 %v1515, 7
      %v1517 = vsub.s32 7, %v1516
      %v1518 = vrot.slane %v33, %v1517
      %v1519 = vadd.f32 %v1511, %v1518
      %v1520 = vadd.f32 %v1512, %v1518
      %v1521 = vadd.f32 %v1513, %v1518
      %v1522 = vadd.f32 %v1514, %v1518
      %v1523 = vmax.f32 %v1519, 0.0
      %v1524 = vmax.f32 %v1520, 0.0
      %v1525 = vmax.f32 %v1521, 0.0
      %v1526 = vmax.f32 %v1522, 0.0
      %v1527 = vlaneseq
      %v1528 = vshrl.u32 %v1527, 7
      %v1529 = vsub.s32 7, %v1528
      %v1530 = vrot.slane %v34, %v1529
      %v1531 = vmul.f32 %v1523, %v1530
      %v1532 = vmul.f32 %v1524, %v1530
      %v1533 = vmul.f32 %v1525, %v1530
      %v1534 = vmul.f32 %v1526, %v1530
      %v1535 = vadd.f32 %v1479, %v1531
      %v1536 = vadd.f32 %v1480, %v1532
      %v1537 = vadd.f32 %v1481, %v1533
      %v1538 = vadd.f32 %v1482, %v1534
      %s1539 = scalar_lea.vmem [#allocation2], %s41
      %1540 = vst [vmem:[%s1539] sm:$0xff] %v1535
      %1541 = vst [vmem:[%s1539 + $0x8] sm:$0xff] %v1536
      %1542 = vst [vmem:[%s1539 + $0x10] sm:$0xff] %v1537
      %1543 = vst [vmem:[%s1539 + $0x18] sm:$0xff] %v1538
    $region38: #{tpu_custom_call.1} parent=1 // loop_footer
      %s40 = sadd.s32 1, %s36
    $region39: #{tpu_custom_call.1} parent=1 // loop_footer_branch
      %35 = sbr.rel target = $region35
    $region40: #{tpu_custom_call.1} parent=1 // loop_exit
      _
    %v1544 = vld [vmem:[#allocation2] sm:$0xff]
    %v1545 = vld [vmem:[#allocation2 + $0x8] sm:$0xff]
    %v1546 = vld [vmem:[#allocation2 + $0x10] sm:$0xff]
    %v1547 = vld [vmem:[#allocation2 + $0x18] sm:$0xff]
    %v1548 = vld [vmem:[#allocation2 + $0x20] sm:$0xff]
    %v1549 = vld [vmem:[#allocation2 + $0x28] sm:$0xff]
    %v1550 = vld [vmem:[#allocation2 + $0x30] sm:$0xff]
    %v1551 = vld [vmem:[#allocation2 + $0x38] sm:$0xff]
    %v1552 = vld [vmem:[#allocation2 + $0x40] sm:$0xff]
    %v1553 = vld [vmem:[#allocation2 + $0x48] sm:$0xff]
    %v1554 = vld [vmem:[#allocation2 + $0x50] sm:$0xff]
    %v1555 = vld [vmem:[#allocation2 + $0x58] sm:$0xff]
    %v1556 = vld [vmem:[#allocation2 + $0x60] sm:$0xff]
    %v1557 = vld [vmem:[#allocation2 + $0x68] sm:$0xff]
    %v1558 = vld [vmem:[#allocation2 + $0x70] sm:$0xff]
    %v1559 = vld [vmem:[#allocation2 + $0x78] sm:$0xff]
    %1560 = vadd.xlane.f32.xlu0 %v1544
    %v1561 = vpop.xlane.xlu0 %1560
    %1562 = vadd.xlane.f32.xlu0 %v1545
    %v1563 = vpop.xlane.xlu0 %1562
    %1564 = vadd.xlane.f32.xlu0 %v1546
    %v1565 = vpop.xlane.xlu0 %1564
    %1566 = vadd.xlane.f32.xlu0 %v1547
    %v1567 = vpop.xlane.xlu0 %1566
    %1568 = vadd.xlane.f32.xlu0 %v1548
    %v1569 = vpop.xlane.xlu0 %1568
    %1570 = vadd.xlane.f32.xlu0 %v1549
    %v1571 = vpop.xlane.xlu0 %1570
    %1572 = vadd.xlane.f32.xlu0 %v1550
    %v1573 = vpop.xlane.xlu0 %1572
    %1574 = vadd.xlane.f32.xlu0 %v1551
    %v1575 = vpop.xlane.xlu0 %1574
    %1576 = vadd.xlane.f32.xlu0 %v1552
    %v1577 = vpop.xlane.xlu0 %1576
    %1578 = vadd.xlane.f32.xlu0 %v1553
    %v1579 = vpop.xlane.xlu0 %1578
    %1580 = vadd.xlane.f32.xlu0 %v1554
    %v1581 = vpop.xlane.xlu0 %1580
    %1582 = vadd.xlane.f32.xlu0 %v1555
    %v1583 = vpop.xlane.xlu0 %1582
    %1584 = vadd.xlane.f32.xlu0 %v1556
    %v1585 = vpop.xlane.xlu0 %1584
    %1586 = vadd.xlane.f32.xlu0 %v1557
    %v1587 = vpop.xlane.xlu0 %1586
    %1588 = vadd.xlane.f32.xlu0 %v1558
    %v1589 = vpop.xlane.xlu0 %1588
    %1590 = vadd.xlane.f32.xlu0 %v1559
    %v1591 = vpop.xlane.xlu0 %1590
    %v1592 = vsub.f32 0.0, %v1561
    %v1593 = vsub.f32 0.0, %v1563
    %v1594 = vsub.f32 0.0, %v1565
    %v1595 = vsub.f32 0.0, %v1567
    %v1596 = vsub.f32 0.0, %v1569
    %v1597 = vsub.f32 0.0, %v1571
    %v1598 = vsub.f32 0.0, %v1573
    %v1599 = vsub.f32 0.0, %v1575
    %v1600 = vsub.f32 0.0, %v1577
    %v1601 = vsub.f32 0.0, %v1579
    %v1602 = vsub.f32 0.0, %v1581
    %v1603 = vsub.f32 0.0, %v1583
    %v1604 = vsub.f32 0.0, %v1585
    %v1605 = vsub.f32 0.0, %v1587
    %v1606 = vsub.f32 0.0, %v1589
    %v1607 = vsub.f32 0.0, %v1591
    %v1624 = vlaneseq
    %v1625 = vand.u32 %v1624, 127
    %v1626 = vlaneseq
    %v1627 = vshrl.u32 %v1626, 7
    %v1628 = vsub.s32 %v1625, %v1627
    %v1629 = vrot.slane %v1592, %v1628
    %v1630 = vadd.s32 %v1625, 4294967288
    %v1631 = vlaneseq
    %v1632 = vshrl.u32 %v1631, 7
    %v1633 = vsub.s32 %v1630, %v1632
    %v1634 = vrot.slane %v1593, %v1633
    %vm1635 = vcmask 130112
    %v1636 = vsel %vm1635, %v1634, %v1629
    %v1637 = vadd.s32 %v1625, 4294967280
    %v1638 = vlaneseq
    %v1639 = vshrl.u32 %v1638, 7
    %v1640 = vsub.s32 %v1637, %v1639
    %v1641 = vrot.slane %v1594, %v1640
    %vm1642 = vcmask 195712
    %v1643 = vsel %vm1642, %v1641, %v1636
    %v1644 = vadd.s32 %v1625, 4294967272
    %v1645 = vlaneseq
    %v1646 = vshrl.u32 %v1645, 7
    %v1647 = vsub.s32 %v1644, %v1646
    %v1648 = vrot.slane %v1595, %v1647
    %vm1649 = vcmask 261312
    %v1650 = vsel %vm1649, %v1648, %v1643
    %v1651 = vadd.s32 %v1625, 4294967264
    %v1652 = vlaneseq
    %v1653 = vshrl.u32 %v1652, 7
    %v1654 = vsub.s32 %v1651, %v1653
    %v1655 = vrot.slane %v1596, %v1654
    %vm1656 = vcmask 326912
    %v1657 = vsel %vm1656, %v1655, %v1650
    %v1658 = vadd.s32 %v1625, 4294967256
    %v1659 = vlaneseq
    %v1660 = vshrl.u32 %v1659, 7
    %v1661 = vsub.s32 %v1658, %v1660
    %v1662 = vrot.slane %v1597, %v1661
    %vm1663 = vcmask 392512
    %v1664 = vsel %vm1663, %v1662, %v1657
    %v1665 = vadd.s32 %v1625, 4294967248
    %v1666 = vlaneseq
    %v1667 = vshrl.u32 %v1666, 7
    %v1668 = vsub.s32 %v1665, %v1667
    %v1669 = vrot.slane %v1598, %v1668
    %vm1670 = vcmask 458112
    %v1671 = vsel %vm1670, %v1669, %v1664
    %v1672 = vadd.s32 %v1625, 4294967240
    %v1673 = vlaneseq
    %v1674 = vshrl.u32 %v1673, 7
    %v1675 = vsub.s32 %v1672, %v1674
    %v1676 = vrot.slane %v1599, %v1675
    %vm1677 = vcmask 523712
    %v1678 = vsel %vm1677, %v1676, %v1671
    %v1679 = vadd.s32 %v1625, 4294967232
    %v1680 = vlaneseq
    %v1681 = vshrl.u32 %v1680, 7
    %v1682 = vsub.s32 %v1679, %v1681
    %v1683 = vrot.slane %v1600, %v1682
    %vm1684 = vcmask 589312
    %v1685 = vsel %vm1684, %v1683, %v1678
    %v1686 = vadd.s32 %v1625, 4294967224
    %v1687 = vlaneseq
    %v1688 = vshrl.u32 %v1687, 7
    %v1689 = vsub.s32 %v1686, %v1688
    %v1690 = vrot.slane %v1601, %v1689
    %vm1691 = vcmask 654912
    %v1692 = vsel %vm1691, %v1690, %v1685
    %v1693 = vadd.s32 %v1625, 4294967216
    %v1694 = vlaneseq
    %v1695 = vshrl.u32 %v1694, 7
    %v1696 = vsub.s32 %v1693, %v1695
    %v1697 = vrot.slane %v1602, %v1696
    %vm1698 = vcmask 720512
    %v1699 = vsel %vm1698, %v1697, %v1692
    %v1700 = vadd.s32 %v1625, 4294967208
    %v1701 = vlaneseq
    %v1702 = vshrl.u32 %v1701, 7
    %v1703 = vsub.s32 %v1700, %v1702
    %v1704 = vrot.slane %v1603, %v1703
    %vm1705 = vcmask 786112
    %v1706 = vsel %vm1705, %v1704, %v1699
    %v1707 = vadd.s32 %v1625, 4294967200
    %v1708 = vlaneseq
    %v1709 = vshrl.u32 %v1708, 7
    %v1710 = vsub.s32 %v1707, %v1709
    %v1711 = vrot.slane %v1604, %v1710
    %vm1712 = vcmask 851712
    %v1713 = vsel %vm1712, %v1711, %v1706
    %v1714 = vadd.s32 %v1625, 4294967192
    %v1715 = vlaneseq
    %v1716 = vshrl.u32 %v1715, 7
    %v1717 = vsub.s32 %v1714, %v1716
    %v1718 = vrot.slane %v1605, %v1717
    %vm1719 = vcmask 917312
    %v1720 = vsel %vm1719, %v1718, %v1713
    %v1721 = vadd.s32 %v1625, 4294967184
    %v1722 = vlaneseq
    %v1723 = vshrl.u32 %v1722, 7
    %v1724 = vsub.s32 %v1721, %v1723
    %v1725 = vrot.slane %v1606, %v1724
    %vm1726 = vcmask 982912
    %v1727 = vsel %vm1726, %v1725, %v1720
    %v1728 = vadd.s32 %v1625, 4294967176
    %v1729 = vlaneseq
    %v1730 = vshrl.u32 %v1729, 7
    %v1731 = vsub.s32 %v1728, %v1730
    %v1732 = vrot.slane %v1607, %v1731
    %vm1733 = vcmask 1048512
    %v1734 = vsel %vm1733, %v1732, %v1727
    %1736 = vst [vmem:[#allocation3] sm:$0x1] %v1734
    // Predicated region
    $region41: #{tpu_custom_call.1} parent=1 // pred_check
      _
    $region42: #{tpu_custom_call.1} parent=1 // pred_check_branch
      %1738 = sbr.rel (0) target = $region44
    $region43: #{tpu_custom_call.1} parent=1 // pred_region
      %s1740 = ssub.s32 16, 16
      %1741 = vsyncadd [#allocation4], %s1740
      %s1743 = sshll.u32 [#allocation3], 4
      %s1744 = int_to_ptr.vmem [resolvable:$true] %s1743
      %1746 = dma.vmem_to_hbm [thread:$0]  %s1744, 16, %s8, [#allocation4]
    $region44: #{tpu_custom_call.1} parent=1 // pred_fallthru
      _
    // Predicated region
    $region45: #{tpu_custom_call.1} parent=1 // pred_check
      _
    $region46: #{tpu_custom_call.1} parent=1 // pred_check_branch
      %1748 = sbr.rel (0) target = $region48
    $region47: #{tpu_custom_call.1} parent=1 // pred_region
      %1749 = dma.done [#allocation4], 16
    $region48: #{tpu_custom_call.1} parent=1 // pred_fallthru
      _
    %1750 = vsyncpa [#allocation4], 1

</llo_original>
